<compile_context>
chip_gen: v5e
topology: v5e:2x2
jax: 0.10.0
libtpu: 0.0.40
codegen_flags: <defaults>
</compile_context>

<pallas_src>
import jax
import jax.numpy as jnp
from jax.experimental import pallas as pl
from jax.experimental.pallas import tpu as pltpu

N_NODES = 256     # number of graph nodes (small, 128-aligned)
N_FEATS = 128     # graph.num_features (scaled down, lane-aligned)
EMBED = 256       # embedding_size (matches reference)
N_CLASSES = 10    # fc output classes
C_PAD = 128       # lane-padded class width for dense stores
DROPOUT_P = 0.5


def _gps_fused_kernel(adj_ref, dinv_ref, xd_ref, w0_ref, b0_ref,
                      w1_ref, b1_ref, wf_ref, bf_ref, out_ref):
    # adj_ref: (N, N) bf16 0/1 adjacency with self loops (unnormalized).
    # dinv_ref: (N, 1) f32 D^-1/2.
    # xd_ref:  (N, F) bf16, dropout already applied in the wrapper.
    dinv = dinv_ref[...]                                   # (N, 1) f32
    a01 = adj_ref[...]                                     # (N, N) bf16

    # ---- conv0: relu( dinv * (A01 @ (dinv * X_drop)) @ W0 + b0 )
    xs = (xd_ref[...].astype(jnp.float32) * dinv).astype(jnp.bfloat16)
    agg = jnp.dot(a01, xs, preferred_element_type=jnp.float32) * dinv
    h1 = jnp.dot(agg.astype(jnp.bfloat16), w0_ref[...],
                 preferred_element_type=jnp.float32) + b0_ref[...]
    h1 = jnp.maximum(h1, 0.0).astype(jnp.bfloat16)         # (N, EMBED), stays in VMEM

    # ---- conv1: relu( dinv * (A01 @ (dinv * H1)) @ W1 + b1 )
    h1s = (h1.astype(jnp.float32) * dinv).astype(jnp.bfloat16)
    agg2 = jnp.dot(a01, h1s, preferred_element_type=jnp.float32) * dinv
    h2 = jnp.dot(agg2.astype(jnp.bfloat16), w1_ref[...],
                 preferred_element_type=jnp.float32) + b1_ref[...]
    h2 = jnp.maximum(h2, 0.0)

    # ---- fc + softmax over the first N_CLASSES lanes of the 128-wide slab.
    logits = jnp.dot(h2.astype(jnp.bfloat16), wf_ref[...],
                     preferred_element_type=jnp.float32) + bf_ref[...]
    lane = jax.lax.broadcasted_iota(jnp.int32, logits.shape, 1)
    logits = jnp.where(lane < N_CLASSES, logits, -1e30)
    m = jnp.max(logits, axis=-1, keepdims=True)
    e = jnp.exp(logits - m)
    s = jnp.sum(e, axis=-1, keepdims=True)
    # EUP approx reciprocal (separate VLIW slot) instead of a VPU f32 divide.
    out_ref[...] = e * pl.reciprocal(s, approx=True)


def _adjacency_parts(edge_index, n):
    """0/1 adjacency with self loops (bf16) + D^-1/2 vector (f32)."""
    a = jnp.zeros((n, n), jnp.float32)
    a = a.at[edge_index[0], edge_index[1]].set(1.0)
    a = a.at[edge_index[1], edge_index[0]].set(1.0)      # symmetrize
    a = jnp.maximum(a, jnp.eye(n, dtype=jnp.float32))    # self loops
    dinv = jax.lax.rsqrt(jnp.sum(a, axis=1))
    return a.astype(jnp.bfloat16), dinv


def gps_forward(x, edge_index, params, dropout_key):
    n = x.shape[0]
    adj01, dinv = _adjacency_parts(edge_index, n)
    dinv_row = dinv.reshape(n, 1)

    # Dropout (training semantics) applied in the wrapper; shipped as bf16.
    keep = jax.random.bernoulli(dropout_key, 1.0 - DROPOUT_P, x.shape)
    xd = (x * keep.astype(jnp.float32) / (1.0 - DROPOUT_P)).astype(jnp.bfloat16)

    w0, b0, w1, b1, wf, bf = params
    w0 = w0.astype(jnp.bfloat16)
    w1 = w1.astype(jnp.bfloat16)
    # Lane-pad the classifier head so the kernel's output store is lane-dense.
    wf_pad = jnp.zeros((EMBED, C_PAD), jnp.float32).at[:, :N_CLASSES].set(wf)
    wf_pad = wf_pad.astype(jnp.bfloat16)
    bf_pad = jnp.zeros((1, C_PAD), jnp.float32).at[:, :N_CLASSES].set(bf)

    probs_pad = pl.pallas_call(
        _gps_fused_kernel,
        out_shape=jax.ShapeDtypeStruct((n, C_PAD), jnp.float32),
        grid=(1,),
        in_specs=[
            pl.BlockSpec((n, n), lambda i: (0, 0)),           # A01 (+I), bf16
            pl.BlockSpec((n, 1), lambda i: (0, 0)),           # D^-1/2
            pl.BlockSpec((n, N_FEATS), lambda i: (0, 0)),     # X after dropout, bf16
            pl.BlockSpec((N_FEATS, EMBED), lambda i: (0, 0)),
            pl.BlockSpec((1, EMBED), lambda i: (0, 0)),
            pl.BlockSpec((EMBED, EMBED), lambda i: (0, 0)),
            pl.BlockSpec((1, EMBED), lambda i: (0, 0)),
            pl.BlockSpec((EMBED, C_PAD), lambda i: (0, 0)),
            pl.BlockSpec((1, C_PAD), lambda i: (0, 0)),
        ],
        out_specs=pl.BlockSpec((n, C_PAD), lambda i: (0, 0)),
        compiler_params=pltpu.CompilerParams(
            dimension_semantics=("arbitrary",)),
    )(adj01, dinv_row, xd, w0, b0, w1, b1, wf_pad, bf_pad)

    return probs_pad[:, :N_CLASSES]


def init_params(key):
    k0, k1, k2 = jax.random.split(key, 3)

    def glorot(k, shape):
        lim = (6.0 / (shape[0] + shape[1])) ** 0.5
        return jax.random.uniform(k, shape, jnp.float32, -lim, lim)

    w0 = glorot(k0, (N_FEATS, EMBED))
    b0 = jnp.zeros((1, EMBED), jnp.float32)
    w1 = glorot(k1, (EMBED, EMBED))
    b1 = jnp.zeros((1, EMBED), jnp.float32)
    wf = glorot(k2, (EMBED, N_CLASSES))
    bf = jnp.zeros((1, N_CLASSES), jnp.float32)
    return (w0, b0, w1, b1, wf, bf)


if __name__ == "__main__":
    key = jax.random.PRNGKey(0)
    kx, ke, kp, kd = jax.random.split(key, 4)

    x = jax.random.normal(kx, (N_NODES, N_FEATS), jnp.float32)
    edge_index = jax.random.randint(ke, (2, 1024), 0, N_NODES, dtype=jnp.int32)
    params = init_params(kp)

    out = gps_forward(x, edge_index, params, kd)
    out = jax.block_until_ready(out)

    assert out.shape == (N_NODES, N_CLASSES)
    assert bool(jnp.all(jnp.isfinite(out)))
    # rows of a softmax output must sum to ~1 (approx reciprocal on the EUP,
    # so allow a slightly looser tolerance than an exact f32 divide).
    assert bool(jnp.allclose(jnp.sum(out, axis=-1), 1.0, atol=2e-3))
    print("KERNEL_OK")
</pallas_src>

<mosaic_0001>
module attributes {stable_mosaic.version = 11 : i64} {
  func.func @_gps_fused_kernel(%arg0: i32, %arg1: memref<256x256xbf16, #tpu.memory_space<vmem>>, %arg2: memref<256x1xf32, #tpu.memory_space<vmem>>, %arg3: memref<256x128xbf16, #tpu.memory_space<vmem>>, %arg4: memref<128x256xbf16, #tpu.memory_space<vmem>>, %arg5: memref<1x256xf32, #tpu.memory_space<vmem>>, %arg6: memref<256x256xbf16, #tpu.memory_space<vmem>>, %arg7: memref<1x256xf32, #tpu.memory_space<vmem>>, %arg8: memref<256x128xbf16, #tpu.memory_space<vmem>>, %arg9: memref<1x128xf32, #tpu.memory_space<vmem>>, %arg10: memref<256x128xf32, #tpu.memory_space<vmem>>) attributes {dimension_semantics = [#tpu.dimension_semantics<arbitrary>], iteration_bounds = array<i64: 1>, scalar_prefetch = 0 : i64, scratch_operands = 0 : i64, tpu.core_type = #tpu.core_type<tc>, window_params = [{pipeline_mode = #tpu.pipeline_mode<synchronous>, transform_indices = @transform_0, window_bounds = array<i64: 256, 256>}, {pipeline_mode = #tpu.pipeline_mode<synchronous>, transform_indices = @transform_1, window_bounds = array<i64: 256, 1>}, {pipeline_mode = #tpu.pipeline_mode<synchronous>, transform_indices = @transform_2, window_bounds = array<i64: 256, 128>}, {pipeline_mode = #tpu.pipeline_mode<synchronous>, transform_indices = @transform_3, window_bounds = array<i64: 128, 256>}, {pipeline_mode = #tpu.pipeline_mode<synchronous>, transform_indices = @transform_4, window_bounds = array<i64: 1, 256>}, {pipeline_mode = #tpu.pipeline_mode<synchronous>, transform_indices = @transform_5, window_bounds = array<i64: 256, 256>}, {pipeline_mode = #tpu.pipeline_mode<synchronous>, transform_indices = @transform_6, window_bounds = array<i64: 1, 256>}, {pipeline_mode = #tpu.pipeline_mode<synchronous>, transform_indices = @transform_7, window_bounds = array<i64: 256, 128>}, {pipeline_mode = #tpu.pipeline_mode<synchronous>, transform_indices = @transform_8, window_bounds = array<i64: 1, 128>}, {pipeline_mode = #tpu.pipeline_mode<synchronous>, transform_indices = @transform_9, window_bounds = array<i64: 256, 128>}]} {
    %c0 = arith.constant 0 : index
    %c0_0 = arith.constant 0 : index
    %0 = vector.load %arg2[%c0, %c0_0] : memref<256x1xf32, #tpu.memory_space<vmem>>, vector<256x1xf32>
    %c0_1 = arith.constant 0 : index
    %c0_2 = arith.constant 0 : index
    %1 = vector.load %arg1[%c0_1, %c0_2] : memref<256x256xbf16, #tpu.memory_space<vmem>>, vector<256x256xbf16>
    %c0_3 = arith.constant 0 : index
    %c0_4 = arith.constant 0 : index
    %2 = vector.load %arg3[%c0_3, %c0_4] : memref<256x128xbf16, #tpu.memory_space<vmem>>, vector<256x128xbf16>
    %3 = arith.extf %2 : vector<256x128xbf16> to vector<256x128xf32>
    %4 = vector.broadcast %0 : vector<256x1xf32> to vector<256x128xf32>
    %5 = arith.mulf %3, %4 : vector<256x128xf32>
    %6 = arith.truncf %5 : vector<256x128xf32> to vector<256x128xbf16>
    %cst = arith.constant dense<0.000000e+00> : vector<256x128xf32>
    %7 = tpu.matmul %1, %6, %cst {dimension_numbers = #tpu.dot_dimension_numbers<[1], [0], [0], [1], [0, 0, 1, 1], [], []>} : vector<256x256xbf16>, vector<256x128xbf16>, vector<256x128xf32> -> vector<256x128xf32>
    %8 = vector.broadcast %0 : vector<256x1xf32> to vector<256x128xf32>
    %9 = arith.mulf %7, %8 : vector<256x128xf32>
    %10 = arith.truncf %9 : vector<256x128xf32> to vector<256x128xbf16>
    %c0_5 = arith.constant 0 : index
    %c0_6 = arith.constant 0 : index
    %11 = vector.load %arg4[%c0_5, %c0_6] : memref<128x256xbf16, #tpu.memory_space<vmem>>, vector<128x256xbf16>
    %cst_7 = arith.constant dense<0.000000e+00> : vector<256x256xf32>
    %12 = tpu.matmul %10, %11, %cst_7 {dimension_numbers = #tpu.dot_dimension_numbers<[1], [0], [0], [1], [0, 0, 1, 1], [], []>} : vector<256x128xbf16>, vector<128x256xbf16>, vector<256x256xf32> -> vector<256x256xf32>
    %c0_8 = arith.constant 0 : index
    %c0_9 = arith.constant 0 : index
    %13 = vector.load %arg5[%c0_8, %c0_9] : memref<1x256xf32, #tpu.memory_space<vmem>>, vector<1x256xf32>
    %14 = vector.broadcast %13 : vector<1x256xf32> to vector<256x256xf32>
    %15 = arith.addf %12, %14 : vector<256x256xf32>
    %cst_10 = arith.constant 0.000000e+00 : f32
    %16 = vector.broadcast %cst_10 : f32 to vector<256x256xf32>
    %17 = arith.maximumf %15, %16 : vector<256x256xf32>
    %18 = arith.truncf %17 : vector<256x256xf32> to vector<256x256xbf16>
    %19 = arith.extf %18 : vector<256x256xbf16> to vector<256x256xf32>
    %20 = vector.broadcast %0 : vector<256x1xf32> to vector<256x256xf32>
    %21 = arith.mulf %19, %20 : vector<256x256xf32>
    %22 = arith.truncf %21 : vector<256x256xf32> to vector<256x256xbf16>
    %cst_11 = arith.constant dense<0.000000e+00> : vector<256x256xf32>
    %23 = tpu.matmul %1, %22, %cst_11 {dimension_numbers = #tpu.dot_dimension_numbers<[1], [0], [0], [1], [0, 0, 1, 1], [], []>} : vector<256x256xbf16>, vector<256x256xbf16>, vector<256x256xf32> -> vector<256x256xf32>
    %24 = vector.broadcast %0 : vector<256x1xf32> to vector<256x256xf32>
    %25 = arith.mulf %23, %24 : vector<256x256xf32>
    %26 = arith.truncf %25 : vector<256x256xf32> to vector<256x256xbf16>
    %c0_12 = arith.constant 0 : index
    %c0_13 = arith.constant 0 : index
    %27 = vector.load %arg6[%c0_12, %c0_13] : memref<256x256xbf16, #tpu.memory_space<vmem>>, vector<256x256xbf16>
    %cst_14 = arith.constant dense<0.000000e+00> : vector<256x256xf32>
    %28 = tpu.matmul %26, %27, %cst_14 {dimension_numbers = #tpu.dot_dimension_numbers<[1], [0], [0], [1], [0, 0, 1, 1], [], []>} : vector<256x256xbf16>, vector<256x256xbf16>, vector<256x256xf32> -> vector<256x256xf32>
    %c0_15 = arith.constant 0 : index
    %c0_16 = arith.constant 0 : index
    %29 = vector.load %arg7[%c0_15, %c0_16] : memref<1x256xf32, #tpu.memory_space<vmem>>, vector<1x256xf32>
    %30 = vector.broadcast %29 : vector<1x256xf32> to vector<256x256xf32>
    %31 = arith.addf %28, %30 : vector<256x256xf32>
    %cst_17 = arith.constant 0.000000e+00 : f32
    %32 = vector.broadcast %cst_17 : f32 to vector<256x256xf32>
    %33 = arith.maximumf %31, %32 : vector<256x256xf32>
    %34 = arith.truncf %33 : vector<256x256xf32> to vector<256x256xbf16>
    %c0_18 = arith.constant 0 : index
    %c0_19 = arith.constant 0 : index
    %35 = vector.load %arg8[%c0_18, %c0_19] : memref<256x128xbf16, #tpu.memory_space<vmem>>, vector<256x128xbf16>
    %cst_20 = arith.constant dense<0.000000e+00> : vector<256x128xf32>
    %36 = tpu.matmul %34, %35, %cst_20 {dimension_numbers = #tpu.dot_dimension_numbers<[1], [0], [0], [1], [0, 0, 1, 1], [], []>} : vector<256x256xbf16>, vector<256x128xbf16>, vector<256x128xf32> -> vector<256x128xf32>
    %c0_21 = arith.constant 0 : index
    %c0_22 = arith.constant 0 : index
    %37 = vector.load %arg9[%c0_21, %c0_22] : memref<1x128xf32, #tpu.memory_space<vmem>>, vector<1x128xf32>
    %38 = vector.broadcast %37 : vector<1x128xf32> to vector<256x128xf32>
    %39 = arith.addf %36, %38 : vector<256x128xf32>
    %40 = tpu.iota {dimensions = array<i32: 1>} : vector<256x128xi32>
    %c10_i32 = arith.constant 10 : i32
    %41 = vector.broadcast %c10_i32 : i32 to vector<256x128xi32>
    %42 = arith.cmpi slt, %40, %41 : vector<256x128xi32>
    %cst_23 = arith.constant -1.000000e+30 : f32
    %43 = vector.broadcast %cst_23 : f32 to vector<256x128xf32>
    %44 = arith.select %42, %39, %43 : vector<256x128xi1>, vector<256x128xf32>
    %cst_24 = arith.constant dense<0xFF800000> : vector<256xf32>
    %45 = vector.multi_reduction <maximumf>, %44, %cst_24 [1] : vector<256x128xf32> to vector<256xf32>
    %46 = vector.shape_cast %45 : vector<256xf32> to vector<256x1xf32>
    %47 = vector.broadcast %46 : vector<256x1xf32> to vector<256x128xf32>
    %48 = arith.subf %44, %47 : vector<256x128xf32>
    %49 = math.exp %48 : vector<256x128xf32>
    %cst_25 = arith.constant dense<0.000000e+00> : vector<256xf32>
    %50 = vector.multi_reduction <add>, %49, %cst_25 [1] : vector<256x128xf32> to vector<256xf32>
    %51 = vector.shape_cast %50 : vector<256xf32> to vector<256x1xf32>
    %52 = tpu.reciprocal %51 {approx = true} : vector<256x1xf32> -> vector<256x1xf32>
    %53 = vector.broadcast %52 : vector<256x1xf32> to vector<256x128xf32>
    %54 = arith.mulf %49, %53 : vector<256x128xf32>
    %c0_26 = arith.constant 0 : index
    %c0_27 = arith.constant 0 : index
    %55 = vector.load %arg10[%c0_26, %c0_27] : memref<256x128xf32, #tpu.memory_space<vmem>>, vector<256x128xf32>
    tpu.vector_store %arg10[%c0_26, %c0_27], %54 {strides = array<i32>} : memref<256x128xf32, #tpu.memory_space<vmem>>, vector<256x128xf32>,
    return
  }
  func.func @transform_0(%arg0: i32) -> (i32, i32) {
    %c0_i32 = arith.constant 0 : i32
    %c0_i32_0 = arith.constant 0 : i32
    %c0_i32_1 = arith.constant 0 : i32
    return %c0_i32, %c0_i32_0 : i32, i32
  }
  func.func @transform_1(%arg0: i32) -> (i32, i32) {
    %c0_i32 = arith.constant 0 : i32
    %c0_i32_0 = arith.constant 0 : i32
    %c0_i32_1 = arith.constant 0 : i32
    return %c0_i32, %c0_i32_0 : i32, i32
  }
  func.func @transform_2(%arg0: i32) -> (i32, i32) {
    %c0_i32 = arith.constant 0 : i32
    %c0_i32_0 = arith.constant 0 : i32
    %c0_i32_1 = arith.constant 0 : i32
    return %c0_i32, %c0_i32_0 : i32, i32
  }
  func.func @transform_3(%arg0: i32) -> (i32, i32) {
    %c0_i32 = arith.constant 0 : i32
    %c0_i32_0 = arith.constant 0 : i32
    %c0_i32_1 = arith.constant 0 : i32
    return %c0_i32, %c0_i32_0 : i32, i32
  }
  func.func @transform_4(%arg0: i32) -> (i32, i32) {
    %c0_i32 = arith.constant 0 : i32
    %c0_i32_0 = arith.constant 0 : i32
    %c0_i32_1 = arith.constant 0 : i32
    return %c0_i32, %c0_i32_0 : i32, i32
  }
  func.func @transform_5(%arg0: i32) -> (i32, i32) {
    %c0_i32 = arith.constant 0 : i32
    %c0_i32_0 = arith.constant 0 : i32
    %c0_i32_1 = arith.constant 0 : i32
    return %c0_i32, %c0_i32_0 : i32, i32
  }
  func.func @transform_6(%arg0: i32) -> (i32, i32) {
    %c0_i32 = arith.constant 0 : i32
    %c0_i32_0 = arith.constant 0 : i32
    %c0_i32_1 = arith.constant 0 : i32
    return %c0_i32, %c0_i32_0 : i32, i32
  }
  func.func @transform_7(%arg0: i32) -> (i32, i32) {
    %c0_i32 = arith.constant 0 : i32
    %c0_i32_0 = arith.constant 0 : i32
    %c0_i32_1 = arith.constant 0 : i32
    return %c0_i32, %c0_i32_0 : i32, i32
  }
  func.func @transform_8(%arg0: i32) -> (i32, i32) {
    %c0_i32 = arith.constant 0 : i32
    %c0_i32_0 = arith.constant 0 : i32
    %c0_i32_1 = arith.constant 0 : i32
    return %c0_i32, %c0_i32_0 : i32, i32
  }
  func.func @transform_9(%arg0: i32) -> (i32, i32) {
    %c0_i32 = arith.constant 0 : i32
    %c0_i32_0 = arith.constant 0 : i32
    %c0_i32_1 = arith.constant 0 : i32
    return %c0_i32, %c0_i32_0 : i32, i32
  }
}

</mosaic_0001>

<llo_original>
// kernel: tpu_custom_call.1
$region0: #{tpu_custom_call.1}
  #allocation0 [shape = 'u32[]', space=smem, size = 0x4, offset = 0x4, fixed_abs, tag = 'smem constant byte address 0x4 - core index']
  #allocation1 [shape = 'u32[72,128]{1,0:T(1,128)}', space=vmem, size = 0x9000, scoped, tag = 'internal scratch']
  %s0 = inlined_call_operand.vmem [shape: bf16[256,256], index: 0, kind: input, shape index: {}]
  %s1 = inlined_call_operand.vmem [shape: f32[256,1], index: 1, kind: input, shape index: {}]
  %s2 = inlined_call_operand.hbm [shape: bf16[256,128], index: 2, kind: input, shape index: {}]
  %s3 = inlined_call_operand.hbm [shape: bf16[128,256], index: 3, kind: input, shape index: {}]
  %s4 = inlined_call_operand.vmem [shape: f32[1,256], index: 4, kind: input, shape index: {}]
  %s5 = inlined_call_operand.hbm [shape: bf16[256,256], index: 5, kind: input, shape index: {}]
  %s6 = inlined_call_operand.vmem [shape: f32[1,256], index: 6, kind: input, shape index: {}]
  %s7 = inlined_call_operand.hbm [shape: bf16[256,128], index: 7, kind: input, shape index: {}]
  %s8 = inlined_call_operand.vmem [shape: f32[1,128], index: 8, kind: input, shape index: {}]
  %s9 = inlined_call_operand.hbm [shape: f32[256,128], index: 9, kind: output, shape index: {}]
  %s10 = sld [smem:[#allocation0]]
  $region62: #{tpu_custom_call.1} parent=0
    _
  %s12 = ssub.s32 1, %s10
  %s13 = scalar_select 0, %s12, %s10
  $region1: #{tpu_custom_call.1} parent=0
    #allocation2 [shape = 'u8[65536]{0}', space=vmem, size = 0x10000, scoped, tag = 'input window, operand 2, single buffered']
    #allocation3 [shape = 's32[1]{0}', space=sflag, size = 0x4, scoped, tag = 'scoped memory for tpu_custom_call.1']
    #allocation4 [shape = 's32[1]{0}', space=sflag, size = 0x4, scoped, tag = 'scoped memory for tpu_custom_call.1']
    #allocation5 [shape = 'u8[65536]{0}', space=vmem, size = 0x10000, scoped, tag = 'input window, operand 3, single buffered']
    #allocation6 [shape = 's32[1]{0}', space=sflag, size = 0x4, scoped, tag = 'scoped memory for tpu_custom_call.1']
    #allocation7 [shape = 'u8[131072]{0}', space=vmem, size = 0x20000, scoped, tag = 'input window, operand 5, single buffered']
    #allocation8 [shape = 'u8[65536]{0}', space=vmem, size = 0x10000, scoped, tag = 'input window, operand 7, single buffered']
    #allocation9 [shape = 's32[1]{0}', space=sflag, size = 0x4, scoped, tag = 'scoped memory for tpu_custom_call.1']
    #allocation10 [shape = 'u8[131072]{0}', space=vmem, size = 0x20000, scoped, tag = 'output window, operand 0, single buffered']
    %14 = vsyncpa [#allocation3], 0
    %15 = vsyncpa [#allocation6], 0
    %16 = vsyncpa [#allocation9], 0
    %17 = vsyncpa [#allocation4], 0
    // Predicated region
    $region2: #{tpu_custom_call.1} parent=1 // pred_check
      _
    $region3: #{tpu_custom_call.1} parent=1 // pred_check_branch
      %19 = sbr.rel (0) target = $region5
    $region4: #{tpu_custom_call.1} parent=1 // pred_region
      _
    $region5: #{tpu_custom_call.1} parent=1 // pred_fallthru
      _
    // Predicated region
    $region6: #{tpu_custom_call.1} parent=1 // pred_check
      _
    $region7: #{tpu_custom_call.1} parent=1 // pred_check_branch
      %21 = sbr.rel (0) target = $region9
    $region8: #{tpu_custom_call.1} parent=1 // pred_region
      _
    $region9: #{tpu_custom_call.1} parent=1 // pred_fallthru
      _
    // Predicated region
    $region10: #{tpu_custom_call.1} parent=1 // pred_check
      _
    $region11: #{tpu_custom_call.1} parent=1 // pred_check_branch
      %23 = sbr.rel (0) target = $region13
    $region12: #{tpu_custom_call.1} parent=1 // pred_region
      %25 = vsyncadd [#allocation3], 0
      %s26 = sshll.u32 %s2, 4
      %s27 = int_to_ptr.hbm [resolvable:$true] %s26
      %s28 = sshll.u32 [#allocation2], 4
      %s29 = int_to_ptr.vmem [resolvable:$true] %s28
      %34 = dma.hbm_to_vmem [thread:$0]  %s27, 2048, %s29, [#allocation3], 64, 64, 4
    $region13: #{tpu_custom_call.1} parent=1 // pred_fallthru
      _
    // Predicated region
    $region14: #{tpu_custom_call.1} parent=1 // pred_check
      _
    $region15: #{tpu_custom_call.1} parent=1 // pred_check_branch
      %36 = sbr.rel (0) target = $region17
    $region16: #{tpu_custom_call.1} parent=1 // pred_region
      %38 = vsyncadd [#allocation6], 0
      %s39 = sshll.u32 %s3, 4
      %s40 = int_to_ptr.hbm [resolvable:$true] %s39
      %s41 = sshll.u32 [#allocation5], 4
      %s42 = int_to_ptr.vmem [resolvable:$true] %s41
      %47 = dma.hbm_to_vmem [thread:$0]  %s40, 2048, %s42, [#allocation6], 128, 128, 8
    $region17: #{tpu_custom_call.1} parent=1 // pred_fallthru
      _
    // Predicated region
    $region18: #{tpu_custom_call.1} parent=1 // pred_check
      _
    $region19: #{tpu_custom_call.1} parent=1 // pred_check_branch
      %49 = sbr.rel (0) target = $region21
    $region20: #{tpu_custom_call.1} parent=1 // pred_region
      _
    $region21: #{tpu_custom_call.1} parent=1 // pred_fallthru
      _
    // Predicated region
    $region22: #{tpu_custom_call.1} parent=1 // pred_check
      _
    $region23: #{tpu_custom_call.1} parent=1 // pred_check_branch
      %51 = sbr.rel (0) target = $region25
    $region24: #{tpu_custom_call.1} parent=1 // pred_region
      %53 = vsyncadd [#allocation6], 0
      %s54 = sshll.u32 %s5, 4
      %s55 = int_to_ptr.hbm [resolvable:$true] %s54
      %s56 = sshll.u32 [#allocation7], 4
      %s57 = int_to_ptr.vmem [resolvable:$true] %s56
      %62 = dma.hbm_to_vmem [thread:$0]  %s55, 4096, %s57, [#allocation6], 128, 128, 8
    $region25: #{tpu_custom_call.1} parent=1 // pred_fallthru
      _
    // Predicated region
    $region26: #{tpu_custom_call.1} parent=1 // pred_check
      _
    $region27: #{tpu_custom_call.1} parent=1 // pred_check_branch
      %64 = sbr.rel (0) target = $region29
    $region28: #{tpu_custom_call.1} parent=1 // pred_region
      _
    $region29: #{tpu_custom_call.1} parent=1 // pred_fallthru
      _
    // Predicated region
    $region30: #{tpu_custom_call.1} parent=1 // pred_check
      _
    $region31: #{tpu_custom_call.1} parent=1 // pred_check_branch
      %66 = sbr.rel (0) target = $region33
    $region32: #{tpu_custom_call.1} parent=1 // pred_region
      %68 = vsyncadd [#allocation9], 0
      %s69 = sshll.u32 %s7, 4
      %s70 = int_to_ptr.hbm [resolvable:$true] %s69
      %s71 = sshll.u32 [#allocation8], 4
      %s72 = int_to_ptr.vmem [resolvable:$true] %s71
      %77 = dma.hbm_to_vmem [thread:$0]  %s70, 2048, %s72, [#allocation9], 64, 64, 4
    $region33: #{tpu_custom_call.1} parent=1 // pred_fallthru
      _
    // Predicated region
    $region34: #{tpu_custom_call.1} parent=1 // pred_check
      _
    $region35: #{tpu_custom_call.1} parent=1 // pred_check_branch
      %79 = sbr.rel (0) target = $region37
    $region36: #{tpu_custom_call.1} parent=1 // pred_region
      _
    $region37: #{tpu_custom_call.1} parent=1 // pred_fallthru
      _
    // Predicated region
    $region38: #{tpu_custom_call.1} parent=1 // pred_check
      _
    $region39: #{tpu_custom_call.1} parent=1 // pred_check_branch
      %81 = sbr.rel (0) target = $region41
    $region40: #{tpu_custom_call.1} parent=1 // pred_region
      %83 = dma.done [#allocation3], 2048
    $region41: #{tpu_custom_call.1} parent=1 // pred_fallthru
      _
    // Predicated region
    $region42: #{tpu_custom_call.1} parent=1 // pred_check
      _
    $region43: #{tpu_custom_call.1} parent=1 // pred_check_branch
      %85 = sbr.rel (0) target = $region45
    $region44: #{tpu_custom_call.1} parent=1 // pred_region
      %87 = dma.done [#allocation6], 2048
    $region45: #{tpu_custom_call.1} parent=1 // pred_fallthru
      _
    // Predicated region
    $region46: #{tpu_custom_call.1} parent=1 // pred_check
      _
    $region47: #{tpu_custom_call.1} parent=1 // pred_check_branch
      %89 = sbr.rel (0) target = $region49
    $region48: #{tpu_custom_call.1} parent=1 // pred_region
      %91 = dma.done [#allocation6], 4096
    $region49: #{tpu_custom_call.1} parent=1 // pred_fallthru
      _
    // Predicated region
    $region50: #{tpu_custom_call.1} parent=1 // pred_check
      _
    $region51: #{tpu_custom_call.1} parent=1 // pred_check_branch
      %93 = sbr.rel (0) target = $region53
    $region52: #{tpu_custom_call.1} parent=1 // pred_region
      %95 = dma.done [#allocation9], 2048
    $region53: #{tpu_custom_call.1} parent=1 // pred_fallthru
      _
    %v96 = vld [vmem:[%s1] sm:$0xff]
    %v97 = vld [vmem:[%s1 + $0x8] sm:$0xff]
    %v98 = vld [vmem:[%s1 + $0x10] sm:$0xff]
    %v99 = vld [vmem:[%s1 + $0x18] sm:$0xff]
    %v100 = vld [vmem:[%s1 + $0x20] sm:$0xff]
    %v101 = vld [vmem:[%s1 + $0x28] sm:$0xff]
    %v102 = vld [vmem:[%s1 + $0x30] sm:$0xff]
    %v103 = vld [vmem:[%s1 + $0x38] sm:$0xff]
    %v104 = vld [vmem:[%s1 + $0x40] sm:$0xff]
    %v105 = vld [vmem:[%s1 + $0x48] sm:$0xff]
    %v106 = vld [vmem:[%s1 + $0x50] sm:$0xff]
    %v107 = vld [vmem:[%s1 + $0x58] sm:$0xff]
    %v108 = vld [vmem:[%s1 + $0x60] sm:$0xff]
    %v109 = vld [vmem:[%s1 + $0x68] sm:$0xff]
    %v110 = vld [vmem:[%s1 + $0x70] sm:$0xff]
    %v111 = vld [vmem:[%s1 + $0x78] sm:$0xff]
    %v112 = vld [vmem:[%s1 + $0x80] sm:$0xff]
    %v113 = vld [vmem:[%s1 + $0x88] sm:$0xff]
    %v114 = vld [vmem:[%s1 + $0x90] sm:$0xff]
    %v115 = vld [vmem:[%s1 + $0x98] sm:$0xff]
    %v116 = vld [vmem:[%s1 + $0xa0] sm:$0xff]
    %v117 = vld [vmem:[%s1 + $0xa8] sm:$0xff]
    %v118 = vld [vmem:[%s1 + $0xb0] sm:$0xff]
    %v119 = vld [vmem:[%s1 + $0xb8] sm:$0xff]
    %v120 = vld [vmem:[%s1 + $0xc0] sm:$0xff]
    %v121 = vld [vmem:[%s1 + $0xc8] sm:$0xff]
    %v122 = vld [vmem:[%s1 + $0xd0] sm:$0xff]
    %v123 = vld [vmem:[%s1 + $0xd8] sm:$0xff]
    %v124 = vld [vmem:[%s1 + $0xe0] sm:$0xff]
    %v125 = vld [vmem:[%s1 + $0xe8] sm:$0xff]
    %v126 = vld [vmem:[%s1 + $0xf0] sm:$0xff]
    %v127 = vld [vmem:[%s1 + $0xf8] sm:$0xff]
    %v128 = vld [vmem:[%s0] sm:$0xff]
    %v129 = vld [vmem:[%s0 + $0x8] sm:$0xff]
    %v130 = vld [vmem:[%s0 + $0x10] sm:$0xff]
    %v131 = vld [vmem:[%s0 + $0x18] sm:$0xff]
    %v132 = vld [vmem:[%s0 + $0x20] sm:$0xff]
    %v133 = vld [vmem:[%s0 + $0x28] sm:$0xff]
    %v134 = vld [vmem:[%s0 + $0x30] sm:$0xff]
    %v135 = vld [vmem:[%s0 + $0x38] sm:$0xff]
    %v136 = vld [vmem:[%s0 + $0x40] sm:$0xff]
    %v137 = vld [vmem:[%s0 + $0x48] sm:$0xff]
    %v138 = vld [vmem:[%s0 + $0x50] sm:$0xff]
    %v139 = vld [vmem:[%s0 + $0x58] sm:$0xff]
    %v140 = vld [vmem:[%s0 + $0x60] sm:$0xff]
    %v141 = vld [vmem:[%s0 + $0x68] sm:$0xff]
    %v142 = vld [vmem:[%s0 + $0x70] sm:$0xff]
    %v143 = vld [vmem:[%s0 + $0x78] sm:$0xff]
    %v144 = vld [vmem:[%s0 + $0x80] sm:$0xff]
    %v145 = vld [vmem:[%s0 + $0x88] sm:$0xff]
    %v146 = vld [vmem:[%s0 + $0x90] sm:$0xff]
    %v147 = vld [vmem:[%s0 + $0x98] sm:$0xff]
    %v148 = vld [vmem:[%s0 + $0xa0] sm:$0xff]
    %v149 = vld [vmem:[%s0 + $0xa8] sm:$0xff]
    %v150 = vld [vmem:[%s0 + $0xb0] sm:$0xff]
    %v151 = vld [vmem:[%s0 + $0xb8] sm:$0xff]
    %v152 = vld [vmem:[%s0 + $0xc0] sm:$0xff]
    %v153 = vld [vmem:[%s0 + $0xc8] sm:$0xff]
    %v154 = vld [vmem:[%s0 + $0xd0] sm:$0xff]
    %v155 = vld [vmem:[%s0 + $0xd8] sm:$0xff]
    %v156 = vld [vmem:[%s0 + $0xe0] sm:$0xff]
    %v157 = vld [vmem:[%s0 + $0xe8] sm:$0xff]
    %v158 = vld [vmem:[%s0 + $0xf0] sm:$0xff]
    %v159 = vld [vmem:[%s0 + $0xf8] sm:$0xff]
    %v160 = vld [vmem:[#allocation2] sm:$0xf]
    %v161 = vld [vmem:[#allocation2 + $0x4] sm:$0xf]
    %v162 = vld [vmem:[#allocation2 + $0x8] sm:$0xf]
    %v163 = vld [vmem:[#allocation2 + $0xc] sm:$0xf]
    %v164 = vld [vmem:[#allocation2 + $0x10] sm:$0xf]
    %v165 = vld [vmem:[#allocation2 + $0x14] sm:$0xf]
    %v166 = vld [vmem:[#allocation2 + $0x18] sm:$0xf]
    %v167 = vld [vmem:[#allocation2 + $0x1c] sm:$0xf]
    %v168 = vld [vmem:[#allocation2 + $0x20] sm:$0xf]
    %v169 = vld [vmem:[#allocation2 + $0x24] sm:$0xf]
    %v170 = vld [vmem:[#allocation2 + $0x28] sm:$0xf]
    %v171 = vld [vmem:[#allocation2 + $0x2c] sm:$0xf]
    %v172 = vld [vmem:[#allocation2 + $0x30] sm:$0xf]
    %v173 = vld [vmem:[#allocation2 + $0x34] sm:$0xf]
    %v174 = vld [vmem:[#allocation2 + $0x38] sm:$0xf]
    %v175 = vld [vmem:[#allocation2 + $0x3c] sm:$0xf]
    %v176 = vld [vmem:[#allocation2 + $0x40] sm:$0xf]
    %v177 = vld [vmem:[#allocation2 + $0x44] sm:$0xf]
    %v178 = vld [vmem:[#allocation2 + $0x48] sm:$0xf]
    %v179 = vld [vmem:[#allocation2 + $0x4c] sm:$0xf]
    %v180 = vld [vmem:[#allocation2 + $0x50] sm:$0xf]
    %v181 = vld [vmem:[#allocation2 + $0x54] sm:$0xf]
    %v182 = vld [vmem:[#allocation2 + $0x58] sm:$0xf]
    %v183 = vld [vmem:[#allocation2 + $0x5c] sm:$0xf]
    %v184 = vld [vmem:[#allocation2 + $0x60] sm:$0xf]
    %v185 = vld [vmem:[#allocation2 + $0x64] sm:$0xf]
    %v186 = vld [vmem:[#allocation2 + $0x68] sm:$0xf]
    %v187 = vld [vmem:[#allocation2 + $0x6c] sm:$0xf]
    %v188 = vld [vmem:[#allocation2 + $0x70] sm:$0xf]
    %v189 = vld [vmem:[#allocation2 + $0x74] sm:$0xf]
    %v190 = vld [vmem:[#allocation2 + $0x78] sm:$0xf]
    %v191 = vld [vmem:[#allocation2 + $0x7c] sm:$0xf]
    %v192 = vunpack.c.l.bf16 %v160
    %v193 = vunpack.c.l.bf16 %v161
    %v194 = vunpack.c.l.bf16 %v162
    %v195 = vunpack.c.l.bf16 %v163
    %v196 = vunpack.c.l.bf16 %v164
    %v197 = vunpack.c.l.bf16 %v165
    %v198 = vunpack.c.l.bf16 %v166
    %v199 = vunpack.c.l.bf16 %v167
    %v200 = vunpack.c.l.bf16 %v168
    %v201 = vunpack.c.l.bf16 %v169
    %v202 = vunpack.c.l.bf16 %v170
    %v203 = vunpack.c.l.bf16 %v171
    %v204 = vunpack.c.l.bf16 %v172
    %v205 = vunpack.c.l.bf16 %v173
    %v206 = vunpack.c.l.bf16 %v174
    %v207 = vunpack.c.l.bf16 %v175
    %v208 = vunpack.c.l.bf16 %v176
    %v209 = vunpack.c.l.bf16 %v177
    %v210 = vunpack.c.l.bf16 %v178
    %v211 = vunpack.c.l.bf16 %v179
    %v212 = vunpack.c.l.bf16 %v180
    %v213 = vunpack.c.l.bf16 %v181
    %v214 = vunpack.c.l.bf16 %v182
    %v215 = vunpack.c.l.bf16 %v183
    %v216 = vunpack.c.l.bf16 %v184
    %v217 = vunpack.c.l.bf16 %v185
    %v218 = vunpack.c.l.bf16 %v186
    %v219 = vunpack.c.l.bf16 %v187
    %v220 = vunpack.c.l.bf16 %v188
    %v221 = vunpack.c.l.bf16 %v189
    %v222 = vunpack.c.l.bf16 %v190
    %v223 = vunpack.c.l.bf16 %v191
    %225 = vset.pattern.permute.xlu0 0
    %226 = vperm.xlu0 %225, %v96
    %v227 = vpop.permute.xlu0 %226
    %230 = vset.pattern.permute.xlu0 0
    %231 = vperm.xlu0 %230, %v97
    %v232 = vpop.permute.xlu0 %231
    %235 = vset.pattern.permute.xlu0 0
    %236 = vperm.xlu0 %235, %v98
    %v237 = vpop.permute.xlu0 %236
    %240 = vset.pattern.permute.xlu0 0
    %241 = vperm.xlu0 %240, %v99
    %v242 = vpop.permute.xlu0 %241
    %245 = vset.pattern.permute.xlu0 0
    %246 = vperm.xlu0 %245, %v100
    %v247 = vpop.permute.xlu0 %246
    %250 = vset.pattern.permute.xlu0 0
    %251 = vperm.xlu0 %250, %v101
    %v252 = vpop.permute.xlu0 %251
    %255 = vset.pattern.permute.xlu0 0
    %256 = vperm.xlu0 %255, %v102
    %v257 = vpop.permute.xlu0 %256
    %260 = vset.pattern.permute.xlu0 0
    %261 = vperm.xlu0 %260, %v103
    %v262 = vpop.permute.xlu0 %261
    %265 = vset.pattern.permute.xlu0 0
    %266 = vperm.xlu0 %265, %v104
    %v267 = vpop.permute.xlu0 %266
    %270 = vset.pattern.permute.xlu0 0
    %271 = vperm.xlu0 %270, %v105
    %v272 = vpop.permute.xlu0 %271
    %275 = vset.pattern.permute.xlu0 0
    %276 = vperm.xlu0 %275, %v106
    %v277 = vpop.permute.xlu0 %276
    %280 = vset.pattern.permute.xlu0 0
    %281 = vperm.xlu0 %280, %v107
    %v282 = vpop.permute.xlu0 %281
    %285 = vset.pattern.permute.xlu0 0
    %286 = vperm.xlu0 %285, %v108
    %v287 = vpop.permute.xlu0 %286
    %290 = vset.pattern.permute.xlu0 0
    %291 = vperm.xlu0 %290, %v109
    %v292 = vpop.permute.xlu0 %291
    %295 = vset.pattern.permute.xlu0 0
    %296 = vperm.xlu0 %295, %v110
    %v297 = vpop.permute.xlu0 %296
    %300 = vset.pattern.permute.xlu0 0
    %301 = vperm.xlu0 %300, %v111
    %v302 = vpop.permute.xlu0 %301
    %305 = vset.pattern.permute.xlu0 0
    %306 = vperm.xlu0 %305, %v112
    %v307 = vpop.permute.xlu0 %306
    %310 = vset.pattern.permute.xlu0 0
    %311 = vperm.xlu0 %310, %v113
    %v312 = vpop.permute.xlu0 %311
    %315 = vset.pattern.permute.xlu0 0
    %316 = vperm.xlu0 %315, %v114
    %v317 = vpop.permute.xlu0 %316
    %320 = vset.pattern.permute.xlu0 0
    %321 = vperm.xlu0 %320, %v115
    %v322 = vpop.permute.xlu0 %321
    %325 = vset.pattern.permute.xlu0 0
    %326 = vperm.xlu0 %325, %v116
    %v327 = vpop.permute.xlu0 %326
    %330 = vset.pattern.permute.xlu0 0
    %331 = vperm.xlu0 %330, %v117
    %v332 = vpop.permute.xlu0 %331
    %335 = vset.pattern.permute.xlu0 0
    %336 = vperm.xlu0 %335, %v118
    %v337 = vpop.permute.xlu0 %336
    %340 = vset.pattern.permute.xlu0 0
    %341 = vperm.xlu0 %340, %v119
    %v342 = vpop.permute.xlu0 %341
    %345 = vset.pattern.permute.xlu0 0
    %346 = vperm.xlu0 %345, %v120
    %v347 = vpop.permute.xlu0 %346
    %350 = vset.pattern.permute.xlu0 0
    %351 = vperm.xlu0 %350, %v121
    %v352 = vpop.permute.xlu0 %351
    %355 = vset.pattern.permute.xlu0 0
    %356 = vperm.xlu0 %355, %v122
    %v357 = vpop.permute.xlu0 %356
    %360 = vset.pattern.permute.xlu0 0
    %361 = vperm.xlu0 %360, %v123
    %v362 = vpop.permute.xlu0 %361
    %365 = vset.pattern.permute.xlu0 0
    %366 = vperm.xlu0 %365, %v124
    %v367 = vpop.permute.xlu0 %366
    %370 = vset.pattern.permute.xlu0 0
    %371 = vperm.xlu0 %370, %v125
    %v372 = vpop.permute.xlu0 %371
    %375 = vset.pattern.permute.xlu0 0
    %376 = vperm.xlu0 %375, %v126
    %v377 = vpop.permute.xlu0 %376
    %380 = vset.pattern.permute.xlu0 0
    %381 = vperm.xlu0 %380, %v127
    %v382 = vpop.permute.xlu0 %381
    %v384 = vmul.f32 %v192, %v227
    %v385 = vmul.f32 %v193, %v232
    %v386 = vmul.f32 %v194, %v237
    %v387 = vmul.f32 %v195, %v242
    %v388 = vmul.f32 %v196, %v247
    %v389 = vmul.f32 %v197, %v252
    %v390 = vmul.f32 %v198, %v257
    %v391 = vmul.f32 %v199, %v262
    %v392 = vmul.f32 %v200, %v267
    %v393 = vmul.f32 %v201, %v272
    %v394 = vmul.f32 %v202, %v277
    %v395 = vmul.f32 %v203, %v282
    %v396 = vmul.f32 %v204, %v287
    %v397 = vmul.f32 %v205, %v292
    %v398 = vmul.f32 %v206, %v297
    %v399 = vmul.f32 %v207, %v302
    %v400 = vmul.f32 %v208, %v307
    %v401 = vmul.f32 %v209, %v312
    %v402 = vmul.f32 %v210, %v317
    %v403 = vmul.f32 %v211, %v322
    %v404 = vmul.f32 %v212, %v327
    %v405 = vmul.f32 %v213, %v332
    %v406 = vmul.f32 %v214, %v337
    %v407 = vmul.f32 %v215, %v342
    %v408 = vmul.f32 %v216, %v347
    %v409 = vmul.f32 %v217, %v352
    %v410 = vmul.f32 %v218, %v357
    %v411 = vmul.f32 %v219, %v362
    %v412 = vmul.f32 %v220, %v367
    %v413 = vmul.f32 %v221, %v372
    %v414 = vmul.f32 %v222, %v377
    %v415 = vmul.f32 %v223, %v382
    %v416 = vpack.c.bf16 %v385, %v384
    %v417 = vpack.c.bf16 %v387, %v386
    %v418 = vpack.c.bf16 %v389, %v388
    %v419 = vpack.c.bf16 %v391, %v390
    %v420 = vpack.c.bf16 %v393, %v392
    %v421 = vpack.c.bf16 %v395, %v394
    %v422 = vpack.c.bf16 %v397, %v396
    %v423 = vpack.c.bf16 %v399, %v398
    %v424 = vpack.c.bf16 %v401, %v400
    %v425 = vpack.c.bf16 %v403, %v402
    %v426 = vpack.c.bf16 %v405, %v404
    %v427 = vpack.c.bf16 %v407, %v406
    %v428 = vpack.c.bf16 %v409, %v408
    %v429 = vpack.c.bf16 %v411, %v410
    %v430 = vpack.c.bf16 %v413, %v412
    %v431 = vpack.c.bf16 %v415, %v414
    %v464 = vunpack.c.l.b16 %v128
    %v465 = vunpack.c.h.b16 %v128
    %v466 = vunpack.c.l.b16 %v129
    %v467 = vunpack.c.h.b16 %v129
    %v468 = vunpack.c.l.b16 %v130
    %v469 = vunpack.c.h.b16 %v130
    %v470 = vunpack.c.l.b16 %v131
    %v471 = vunpack.c.h.b16 %v131
    %v472 = vunpack.c.l.b16 %v132
    %v473 = vunpack.c.h.b16 %v132
    %v474 = vunpack.c.l.b16 %v133
    %v475 = vunpack.c.h.b16 %v133
    %v476 = vunpack.c.l.b16 %v134
    %v477 = vunpack.c.h.b16 %v134
    %v478 = vunpack.c.l.b16 %v135
    %v479 = vunpack.c.h.b16 %v135
    %v480 = vunpack.c.l.b16 %v136
    %v481 = vunpack.c.h.b16 %v136
    %v482 = vunpack.c.l.b16 %v137
    %v483 = vunpack.c.h.b16 %v137
    %v484 = vunpack.c.l.b16 %v138
    %v485 = vunpack.c.h.b16 %v138
    %v486 = vunpack.c.l.b16 %v139
    %v487 = vunpack.c.h.b16 %v139
    %v488 = vunpack.c.l.b16 %v140
    %v489 = vunpack.c.h.b16 %v140
    %v490 = vunpack.c.l.b16 %v141
    %v491 = vunpack.c.h.b16 %v141
    %v492 = vunpack.c.l.b16 %v142
    %v493 = vunpack.c.h.b16 %v142
    %v494 = vunpack.c.l.b16 %v143
    %v495 = vunpack.c.h.b16 %v143
    %v496 = vunpack.c.l.b16 %v144
    %v497 = vunpack.c.h.b16 %v144
    %v498 = vunpack.c.l.b16 %v145
    %v499 = vunpack.c.h.b16 %v145
    %v500 = vunpack.c.l.b16 %v146
    %v501 = vunpack.c.h.b16 %v146
    %v502 = vunpack.c.l.b16 %v147
    %v503 = vunpack.c.h.b16 %v147
    %v504 = vunpack.c.l.b16 %v148
    %v505 = vunpack.c.h.b16 %v148
    %v506 = vunpack.c.l.b16 %v149
    %v507 = vunpack.c.h.b16 %v149
    %v508 = vunpack.c.l.b16 %v150
    %v509 = vunpack.c.h.b16 %v150
    %v510 = vunpack.c.l.b16 %v151
    %v511 = vunpack.c.h.b16 %v151
    %v512 = vunpack.c.l.b16 %v152
    %v513 = vunpack.c.h.b16 %v152
    %v514 = vunpack.c.l.b16 %v153
    %v515 = vunpack.c.h.b16 %v153
    %v516 = vunpack.c.l.b16 %v154
    %v517 = vunpack.c.h.b16 %v154
    %v518 = vunpack.c.l.b16 %v155
    %v519 = vunpack.c.h.b16 %v155
    %v520 = vunpack.c.l.b16 %v156
    %v521 = vunpack.c.h.b16 %v156
    %v522 = vunpack.c.l.b16 %v157
    %v523 = vunpack.c.h.b16 %v157
    %v524 = vunpack.c.l.b16 %v158
    %v525 = vunpack.c.h.b16 %v158
    %v526 = vunpack.c.l.b16 %v159
    %v527 = vunpack.c.h.b16 %v159
    %v528 = vpack.c.b16 %v466, %v464
    %v529 = vpack.c.b16 %v467, %v465
    %v530 = vpack.c.b16 %v470, %v468
    %v531 = vpack.c.b16 %v471, %v469
    %v532 = vpack.c.b16 %v474, %v472
    %v533 = vpack.c.b16 %v475, %v473
    %v534 = vpack.c.b16 %v478, %v476
    %v535 = vpack.c.b16 %v479, %v477
    %v536 = vpack.c.b16 %v482, %v480
    %v537 = vpack.c.b16 %v483, %v481
    %v538 = vpack.c.b16 %v486, %v484
    %v539 = vpack.c.b16 %v487, %v485
    %v540 = vpack.c.b16 %v490, %v488
    %v541 = vpack.c.b16 %v491, %v489
    %v542 = vpack.c.b16 %v494, %v492
    %v543 = vpack.c.b16 %v495, %v493
    %v544 = vpack.c.b16 %v498, %v496
    %v545 = vpack.c.b16 %v499, %v497
    %v546 = vpack.c.b16 %v502, %v500
    %v547 = vpack.c.b16 %v503, %v501
    %v548 = vpack.c.b16 %v506, %v504
    %v549 = vpack.c.b16 %v507, %v505
    %v550 = vpack.c.b16 %v510, %v508
    %v551 = vpack.c.b16 %v511, %v509
    %v552 = vpack.c.b16 %v514, %v512
    %v553 = vpack.c.b16 %v515, %v513
    %v554 = vpack.c.b16 %v518, %v516
    %v555 = vpack.c.b16 %v519, %v517
    %v556 = vpack.c.b16 %v522, %v520
    %v557 = vpack.c.b16 %v523, %v521
    %v558 = vpack.c.b16 %v526, %v524
    %v559 = vpack.c.b16 %v527, %v525
    %592 = vmatpush.bf16.msra.mxu0 %v423
    %593 = vmatpush.bf16.msra.mxu0 %v422
    %594 = vmatpush.bf16.msra.mxu0 %v421
    %595 = vmatpush.bf16.msra.mxu0 %v420
    %596 = vmatpush.bf16.msra.mxu0 %v419
    %597 = vmatpush.bf16.msra.mxu0 %v418
    %598 = vmatpush.bf16.msra.mxu0 %v417
    %599 = vmatpush.bf16.msra.mxu0 %v416
    %600 = vmatmul.bf16.gmra.mxu0 %v528
    %v601 = vpop.f32.mrf.mxu0
    %v602 = vadd.f32 0.0, %v601
    %v603 = vpop.f32.mrf.mxu0
    %v604 = vadd.f32 0.0, %v603
    %605 = vmatmul.bf16.gmra.mxu0 %v530
    %v606 = vpop.f32.mrf.mxu0
    %v607 = vadd.f32 0.0, %v606
    %v608 = vpop.f32.mrf.mxu0
    %v609 = vadd.f32 0.0, %v608
    %610 = vmatmul.bf16.gmra.mxu0 %v532
    %v611 = vpop.f32.mrf.mxu0
    %v612 = vadd.f32 0.0, %v611
    %v613 = vpop.f32.mrf.mxu0
    %v614 = vadd.f32 0.0, %v613
    %615 = vmatmul.bf16.gmra.mxu0 %v534
    %v616 = vpop.f32.mrf.mxu0
    %v617 = vadd.f32 0.0, %v616
    %v618 = vpop.f32.mrf.mxu0
    %v619 = vadd.f32 0.0, %v618
    %620 = vmatmul.bf16.gmra.mxu0 %v536
    %v621 = vpop.f32.mrf.mxu0
    %v622 = vadd.f32 0.0, %v621
    %v623 = vpop.f32.mrf.mxu0
    %v624 = vadd.f32 0.0, %v623
    %625 = vmatmul.bf16.gmra.mxu0 %v538
    %v626 = vpop.f32.mrf.mxu0
    %v627 = vadd.f32 0.0, %v626
    %v628 = vpop.f32.mrf.mxu0
    %v629 = vadd.f32 0.0, %v628
    %630 = vmatmul.bf16.gmra.mxu0 %v540
    %v631 = vpop.f32.mrf.mxu0
    %v632 = vadd.f32 0.0, %v631
    %v633 = vpop.f32.mrf.mxu0
    %v634 = vadd.f32 0.0, %v633
    %635 = vmatmul.bf16.gmra.mxu0 %v542
    %v636 = vpop.f32.mrf.mxu0
    %v637 = vadd.f32 0.0, %v636
    %v638 = vpop.f32.mrf.mxu0
    %v639 = vadd.f32 0.0, %v638
    %640 = vmatmul.bf16.gmra.mxu0 %v544
    %v641 = vpop.f32.mrf.mxu0
    %v642 = vadd.f32 0.0, %v641
    %v643 = vpop.f32.mrf.mxu0
    %v644 = vadd.f32 0.0, %v643
    %645 = vmatmul.bf16.gmra.mxu0 %v546
    %v646 = vpop.f32.mrf.mxu0
    %v647 = vadd.f32 0.0, %v646
    %v648 = vpop.f32.mrf.mxu0
    %v649 = vadd.f32 0.0, %v648
    %650 = vmatmul.bf16.gmra.mxu0 %v548
    %v651 = vpop.f32.mrf.mxu0
    %v652 = vadd.f32 0.0, %v651
    %v653 = vpop.f32.mrf.mxu0
    %v654 = vadd.f32 0.0, %v653
    %655 = vmatmul.bf16.gmra.mxu0 %v550
    %v656 = vpop.f32.mrf.mxu0
    %v657 = vadd.f32 0.0, %v656
    %v658 = vpop.f32.mrf.mxu0
    %v659 = vadd.f32 0.0, %v658
    %660 = vmatmul.bf16.gmra.mxu0 %v552
    %v661 = vpop.f32.mrf.mxu0
    %v662 = vadd.f32 0.0, %v661
    %v663 = vpop.f32.mrf.mxu0
    %v664 = vadd.f32 0.0, %v663
    %665 = vmatmul.bf16.gmra.mxu0 %v554
    %v666 = vpop.f32.mrf.mxu0
    %v667 = vadd.f32 0.0, %v666
    %v668 = vpop.f32.mrf.mxu0
    %v669 = vadd.f32 0.0, %v668
    %670 = vmatmul.bf16.gmra.mxu0 %v556
    %v671 = vpop.f32.mrf.mxu0
    %v672 = vadd.f32 0.0, %v671
    %v673 = vpop.f32.mrf.mxu0
    %v674 = vadd.f32 0.0, %v673
    %675 = vmatmul.bf16.gmra.mxu0 %v558
    %v676 = vpop.f32.mrf.mxu0
    %v677 = vadd.f32 0.0, %v676
    %v678 = vpop.f32.mrf.mxu0
    %v679 = vadd.f32 0.0, %v678
    %680 = vdwg.mxu0
    %681 = vmatpush.bf16.msra.mxu0 %v431
    %682 = vmatpush.bf16.msra.mxu0 %v430
    %683 = vmatpush.bf16.msra.mxu0 %v429
    %684 = vmatpush.bf16.msra.mxu0 %v428
    %685 = vmatpush.bf16.msra.mxu0 %v427
    %686 = vmatpush.bf16.msra.mxu0 %v426
    %687 = vmatpush.bf16.msra.mxu0 %v425
    %688 = vmatpush.bf16.msra.mxu0 %v424
    %689 = vmatmul.bf16.gmra.mxu0 %v529
    %v690 = vpop.f32.mrf.mxu0
    %v691 = vadd.f32 %v602, %v690
    %v692 = vpop.f32.mrf.mxu0
    %v693 = vadd.f32 %v604, %v692
    %694 = vmatmul.bf16.gmra.mxu0 %v531
    %v695 = vpop.f32.mrf.mxu0
    %v696 = vadd.f32 %v607, %v695
    %v697 = vpop.f32.mrf.mxu0
    %v698 = vadd.f32 %v609, %v697
    %699 = vmatmul.bf16.gmra.mxu0 %v533
    %v700 = vpop.f32.mrf.mxu0
    %v701 = vadd.f32 %v612, %v700
    %v702 = vpop.f32.mrf.mxu0
    %v703 = vadd.f32 %v614, %v702
    %704 = vmatmul.bf16.gmra.mxu0 %v535
    %v705 = vpop.f32.mrf.mxu0
    %v706 = vadd.f32 %v617, %v705
    %v707 = vpop.f32.mrf.mxu0
    %v708 = vadd.f32 %v619, %v707
    %709 = vmatmul.bf16.gmra.mxu0 %v537
    %v710 = vpop.f32.mrf.mxu0
    %v711 = vadd.f32 %v622, %v710
    %v712 = vpop.f32.mrf.mxu0
    %v713 = vadd.f32 %v624, %v712
    %714 = vmatmul.bf16.gmra.mxu0 %v539
    %v715 = vpop.f32.mrf.mxu0
    %v716 = vadd.f32 %v627, %v715
    %v717 = vpop.f32.mrf.mxu0
    %v718 = vadd.f32 %v629, %v717
    %719 = vmatmul.bf16.gmra.mxu0 %v541
    %v720 = vpop.f32.mrf.mxu0
    %v721 = vadd.f32 %v632, %v720
    %v722 = vpop.f32.mrf.mxu0
    %v723 = vadd.f32 %v634, %v722
    %724 = vmatmul.bf16.gmra.mxu0 %v543
    %v725 = vpop.f32.mrf.mxu0
    %v726 = vadd.f32 %v637, %v725
    %v727 = vpop.f32.mrf.mxu0
    %v728 = vadd.f32 %v639, %v727
    %729 = vmatmul.bf16.gmra.mxu0 %v545
    %v730 = vpop.f32.mrf.mxu0
    %v731 = vadd.f32 %v642, %v730
    %v732 = vpop.f32.mrf.mxu0
    %v733 = vadd.f32 %v644, %v732
    %734 = vmatmul.bf16.gmra.mxu0 %v547
    %v735 = vpop.f32.mrf.mxu0
    %v736 = vadd.f32 %v647, %v735
    %v737 = vpop.f32.mrf.mxu0
    %v738 = vadd.f32 %v649, %v737
    %739 = vmatmul.bf16.gmra.mxu0 %v549
    %v740 = vpop.f32.mrf.mxu0
    %v741 = vadd.f32 %v652, %v740
    %v742 = vpop.f32.mrf.mxu0
    %v743 = vadd.f32 %v654, %v742
    %744 = vmatmul.bf16.gmra.mxu0 %v551
    %v745 = vpop.f32.mrf.mxu0
    %v746 = vadd.f32 %v657, %v745
    %v747 = vpop.f32.mrf.mxu0
    %v748 = vadd.f32 %v659, %v747
    %749 = vmatmul.bf16.gmra.mxu0 %v553
    %v750 = vpop.f32.mrf.mxu0
    %v751 = vadd.f32 %v662, %v750
    %v752 = vpop.f32.mrf.mxu0
    %v753 = vadd.f32 %v664, %v752
    %754 = vmatmul.bf16.gmra.mxu0 %v555
    %v755 = vpop.f32.mrf.mxu0
    %v756 = vadd.f32 %v667, %v755
    %v757 = vpop.f32.mrf.mxu0
    %v758 = vadd.f32 %v669, %v757
    %759 = vmatmul.bf16.gmra.mxu0 %v557
    %v760 = vpop.f32.mrf.mxu0
    %v761 = vadd.f32 %v672, %v760
    %v762 = vpop.f32.mrf.mxu0
    %v763 = vadd.f32 %v674, %v762
    %764 = vmatmul.bf16.gmra.mxu0 %v559
    %v765 = vpop.f32.mrf.mxu0
    %v766 = vadd.f32 %v677, %v765
    %v767 = vpop.f32.mrf.mxu0
    %v768 = vadd.f32 %v679, %v767
    %769 = vdwg.mxu0
    %v770 = vmul.f32 %v691, %v227
    %v771 = vmul.f32 %v693, %v232
    %v772 = vmul.f32 %v696, %v237
    %v773 = vmul.f32 %v698, %v242
    %v774 = vmul.f32 %v701, %v247
    %v775 = vmul.f32 %v703, %v252
    %v776 = vmul.f32 %v706, %v257
    %v777 = vmul.f32 %v708, %v262
    %v778 = vmul.f32 %v711, %v267
    %v779 = vmul.f32 %v713, %v272
    %v780 = vmul.f32 %v716, %v277
    %v781 = vmul.f32 %v718, %v282
    %v782 = vmul.f32 %v721, %v287
    %v783 = vmul.f32 %v723, %v292
    %v784 = vmul.f32 %v726, %v297
    %v785 = vmul.f32 %v728, %v302
    %v786 = vmul.f32 %v731, %v307
    %v787 = vmul.f32 %v733, %v312
    %v788 = vmul.f32 %v736, %v317
    %v789 = vmul.f32 %v738, %v322
    %v790 = vmul.f32 %v741, %v327
    %v791 = vmul.f32 %v743, %v332
    %v792 = vmul.f32 %v746, %v337
    %v793 = vmul.f32 %v748, %v342
    %v794 = vmul.f32 %v751, %v347
    %v795 = vmul.f32 %v753, %v352
    %v796 = vmul.f32 %v756, %v357
    %v797 = vmul.f32 %v758, %v362
    %v798 = vmul.f32 %v761, %v367
    %v799 = vmul.f32 %v763, %v372
    %v800 = vmul.f32 %v766, %v377
    %v801 = vmul.f32 %v768, %v382
    %v802 = vpack.c.bf16 %v771, %v770
    %v803 = vpack.c.bf16 %v773, %v772
    %v804 = vpack.c.bf16 %v775, %v774
    %v805 = vpack.c.bf16 %v777, %v776
    %v806 = vpack.c.bf16 %v779, %v778
    %v807 = vpack.c.bf16 %v781, %v780
    %v808 = vpack.c.bf16 %v783, %v782
    %v809 = vpack.c.bf16 %v785, %v784
    %v810 = vpack.c.bf16 %v787, %v786
    %v811 = vpack.c.bf16 %v789, %v788
    %v812 = vpack.c.bf16 %v791, %v790
    %v813 = vpack.c.bf16 %v793, %v792
    %v814 = vpack.c.bf16 %v795, %v794
    %v815 = vpack.c.bf16 %v797, %v796
    %v816 = vpack.c.bf16 %v799, %v798
    %v817 = vpack.c.bf16 %v801, %v800
    %v818 = vld [vmem:[#allocation5] sm:$0xff]
    %v819 = vld [vmem:[#allocation5 + $0x8] sm:$0xff]
    %v820 = vld [vmem:[#allocation5 + $0x10] sm:$0xff]
    %v821 = vld [vmem:[#allocation5 + $0x18] sm:$0xff]
    %v822 = vld [vmem:[#allocation5 + $0x20] sm:$0xff]
    %v823 = vld [vmem:[#allocation5 + $0x28] sm:$0xff]
    %v824 = vld [vmem:[#allocation5 + $0x30] sm:$0xff]
    %v825 = vld [vmem:[#allocation5 + $0x38] sm:$0xff]
    %v826 = vld [vmem:[#allocation5 + $0x40] sm:$0xff]
    %v827 = vld [vmem:[#allocation5 + $0x48] sm:$0xff]
    %v828 = vld [vmem:[#allocation5 + $0x50] sm:$0xff]
    %v829 = vld [vmem:[#allocation5 + $0x58] sm:$0xff]
    %v830 = vld [vmem:[#allocation5 + $0x60] sm:$0xff]
    %v831 = vld [vmem:[#allocation5 + $0x68] sm:$0xff]
    %v832 = vld [vmem:[#allocation5 + $0x70] sm:$0xff]
    %v833 = vld [vmem:[#allocation5 + $0x78] sm:$0xff]
    %v834 = vld [vmem:[%s4] sm:$0x3]
    %v836 = vperm.slane %v834, 0
    %v837 = vperm.slane %v834, 1
    %v856 = vunpack.c.l.b16 %v818
    %v857 = vunpack.c.h.b16 %v818
    %v858 = vunpack.c.l.b16 %v819
    %v859 = vunpack.c.h.b16 %v819
    %v860 = vunpack.c.l.b16 %v820
    %v861 = vunpack.c.h.b16 %v820
    %v862 = vunpack.c.l.b16 %v821
    %v863 = vunpack.c.h.b16 %v821
    %v864 = vunpack.c.l.b16 %v822
    %v865 = vunpack.c.h.b16 %v822
    %v866 = vunpack.c.l.b16 %v823
    %v867 = vunpack.c.h.b16 %v823
    %v868 = vunpack.c.l.b16 %v824
    %v869 = vunpack.c.h.b16 %v824
    %v870 = vunpack.c.l.b16 %v825
    %v871 = vunpack.c.h.b16 %v825
    %v872 = vunpack.c.l.b16 %v826
    %v873 = vunpack.c.h.b16 %v826
    %v874 = vunpack.c.l.b16 %v827
    %v875 = vunpack.c.h.b16 %v827
    %v876 = vunpack.c.l.b16 %v828
    %v877 = vunpack.c.h.b16 %v828
    %v878 = vunpack.c.l.b16 %v829
    %v879 = vunpack.c.h.b16 %v829
    %v880 = vunpack.c.l.b16 %v830
    %v881 = vunpack.c.h.b16 %v830
    %v882 = vunpack.c.l.b16 %v831
    %v883 = vunpack.c.h.b16 %v831
    %v884 = vunpack.c.l.b16 %v832
    %v885 = vunpack.c.h.b16 %v832
    %v886 = vunpack.c.l.b16 %v833
    %v887 = vunpack.c.h.b16 %v833
    %v888 = vpack.c.b16 %v858, %v856
    %v889 = vpack.c.b16 %v859, %v857
    %v890 = vpack.c.b16 %v862, %v860
    %v891 = vpack.c.b16 %v863, %v861
    %v892 = vpack.c.b16 %v866, %v864
    %v893 = vpack.c.b16 %v867, %v865
    %v894 = vpack.c.b16 %v870, %v868
    %v895 = vpack.c.b16 %v871, %v869
    %v896 = vpack.c.b16 %v874, %v872
    %v897 = vpack.c.b16 %v875, %v873
    %v898 = vpack.c.b16 %v878, %v876
    %v899 = vpack.c.b16 %v879, %v877
    %v900 = vpack.c.b16 %v882, %v880
    %v901 = vpack.c.b16 %v883, %v881
    %v902 = vpack.c.b16 %v886, %v884
    %v903 = vpack.c.b16 %v887, %v885
    %920 = vmatpush.bf16.msra.mxu0 %v902
    %921 = vmatpush.bf16.msra.mxu0 %v900
    %922 = vmatpush.bf16.msra.mxu0 %v898
    %923 = vmatpush.bf16.msra.mxu0 %v896
    %924 = vmatpush.bf16.msra.mxu0 %v894
    %925 = vmatpush.bf16.msra.mxu0 %v892
    %926 = vmatpush.bf16.msra.mxu0 %v890
    %927 = vmatpush.bf16.msra.mxu0 %v888
    %928 = vmatmul.bf16.gmra.mxu0 %v802
    %v929 = vpop.f32.mrf.mxu0
    %v930 = vadd.f32 %v836, %v929
    %v931 = vpop.f32.mrf.mxu0
    %v932 = vadd.f32 %v836, %v931
    %933 = vmatmul.bf16.gmra.mxu0 %v803
    %v934 = vpop.f32.mrf.mxu0
    %v935 = vadd.f32 %v836, %v934
    %v936 = vpop.f32.mrf.mxu0
    %v937 = vadd.f32 %v836, %v936
    %938 = vmatmul.bf16.gmra.mxu0 %v804
    %v939 = vpop.f32.mrf.mxu0
    %v940 = vadd.f32 %v836, %v939
    %v941 = vpop.f32.mrf.mxu0
    %v942 = vadd.f32 %v836, %v941
    %943 = vmatmul.bf16.gmra.mxu0 %v805
    %v944 = vpop.f32.mrf.mxu0
    %v945 = vadd.f32 %v836, %v944
    %v946 = vpop.f32.mrf.mxu0
    %v947 = vadd.f32 %v836, %v946
    %948 = vmatmul.bf16.gmra.mxu0 %v806
    %v949 = vpop.f32.mrf.mxu0
    %v950 = vadd.f32 %v836, %v949
    %v951 = vpop.f32.mrf.mxu0
    %v952 = vadd.f32 %v836, %v951
    %953 = vmatmul.bf16.gmra.mxu0 %v807
    %v954 = vpop.f32.mrf.mxu0
    %v955 = vadd.f32 %v836, %v954
    %v956 = vpop.f32.mrf.mxu0
    %v957 = vadd.f32 %v836, %v956
    %958 = vmatmul.bf16.gmra.mxu0 %v808
    %v959 = vpop.f32.mrf.mxu0
    %v960 = vadd.f32 %v836, %v959
    %v961 = vpop.f32.mrf.mxu0
    %v962 = vadd.f32 %v836, %v961
    %963 = vmatmul.bf16.gmra.mxu0 %v809
    %v964 = vpop.f32.mrf.mxu0
    %v965 = vadd.f32 %v836, %v964
    %v966 = vpop.f32.mrf.mxu0
    %v967 = vadd.f32 %v836, %v966
    %968 = vmatmul.bf16.gmra.mxu0 %v810
    %v969 = vpop.f32.mrf.mxu0
    %v970 = vadd.f32 %v836, %v969
    %v971 = vpop.f32.mrf.mxu0
    %v972 = vadd.f32 %v836, %v971
    %973 = vmatmul.bf16.gmra.mxu0 %v811
    %v974 = vpop.f32.mrf.mxu0
    %v975 = vadd.f32 %v836, %v974
    %v976 = vpop.f32.mrf.mxu0
    %v977 = vadd.f32 %v836, %v976
    %978 = vmatmul.bf16.gmra.mxu0 %v812
    %v979 = vpop.f32.mrf.mxu0
    %v980 = vadd.f32 %v836, %v979
    %v981 = vpop.f32.mrf.mxu0
    %v982 = vadd.f32 %v836, %v981
    %983 = vmatmul.bf16.gmra.mxu0 %v813
    %v984 = vpop.f32.mrf.mxu0
    %v985 = vadd.f32 %v836, %v984
    %v986 = vpop.f32.mrf.mxu0
    %v987 = vadd.f32 %v836, %v986
    %988 = vmatmul.bf16.gmra.mxu0 %v814
    %v989 = vpop.f32.mrf.mxu0
    %v990 = vadd.f32 %v836, %v989
    %v991 = vpop.f32.mrf.mxu0
    %v992 = vadd.f32 %v836, %v991
    %993 = vmatmul.bf16.gmra.mxu0 %v815
    %v994 = vpop.f32.mrf.mxu0
    %v995 = vadd.f32 %v836, %v994
    %v996 = vpop.f32.mrf.mxu0
    %v997 = vadd.f32 %v836, %v996
    %998 = vmatmul.bf16.gmra.mxu0 %v816
    %v999 = vpop.f32.mrf.mxu0
    %v1000 = vadd.f32 %v836, %v999
    %v1001 = vpop.f32.mrf.mxu0
    %v1002 = vadd.f32 %v836, %v1001
    %1003 = vmatmul.bf16.gmra.mxu0 %v817
    %v1004 = vpop.f32.mrf.mxu0
    %v1005 = vadd.f32 %v836, %v1004
    %v1006 = vpop.f32.mrf.mxu0
    %v1007 = vadd.f32 %v836, %v1006
    %1008 = vdwg.mxu0
    %1009 = vmatpush.bf16.msra.mxu0 %v903
    %1010 = vmatpush.bf16.msra.mxu0 %v901
    %1011 = vmatpush.bf16.msra.mxu0 %v899
    %1012 = vmatpush.bf16.msra.mxu0 %v897
    %1013 = vmatpush.bf16.msra.mxu0 %v895
    %1014 = vmatpush.bf16.msra.mxu0 %v893
    %1015 = vmatpush.bf16.msra.mxu0 %v891
    %1016 = vmatpush.bf16.msra.mxu0 %v889
    %1017 = vmatmul.bf16.gmra.mxu0 %v802
    %v1018 = vpop.f32.mrf.mxu0
    %v1019 = vadd.f32 %v837, %v1018
    %v1020 = vpop.f32.mrf.mxu0
    %v1021 = vadd.f32 %v837, %v1020
    %1022 = vmatmul.bf16.gmra.mxu0 %v803
    %v1023 = vpop.f32.mrf.mxu0
    %v1024 = vadd.f32 %v837, %v1023
    %v1025 = vpop.f32.mrf.mxu0
    %v1026 = vadd.f32 %v837, %v1025
    %1027 = vmatmul.bf16.gmra.mxu0 %v804
    %v1028 = vpop.f32.mrf.mxu0
    %v1029 = vadd.f32 %v837, %v1028
    %v1030 = vpop.f32.mrf.mxu0
    %v1031 = vadd.f32 %v837, %v1030
    %1032 = vmatmul.bf16.gmra.mxu0 %v805
    %v1033 = vpop.f32.mrf.mxu0
    %v1034 = vadd.f32 %v837, %v1033
    %v1035 = vpop.f32.mrf.mxu0
    %v1036 = vadd.f32 %v837, %v1035
    %1037 = vmatmul.bf16.gmra.mxu0 %v806
    %v1038 = vpop.f32.mrf.mxu0
    %v1039 = vadd.f32 %v837, %v1038
    %v1040 = vpop.f32.mrf.mxu0
    %v1041 = vadd.f32 %v837, %v1040
    %1042 = vmatmul.bf16.gmra.mxu0 %v807
    %v1043 = vpop.f32.mrf.mxu0
    %v1044 = vadd.f32 %v837, %v1043
    %v1045 = vpop.f32.mrf.mxu0
    %v1046 = vadd.f32 %v837, %v1045
    %1047 = vmatmul.bf16.gmra.mxu0 %v808
    %v1048 = vpop.f32.mrf.mxu0
    %v1049 = vadd.f32 %v837, %v1048
    %v1050 = vpop.f32.mrf.mxu0
    %v1051 = vadd.f32 %v837, %v1050
    %1052 = vmatmul.bf16.gmra.mxu0 %v809
    %v1053 = vpop.f32.mrf.mxu0
    %v1054 = vadd.f32 %v837, %v1053
    %v1055 = vpop.f32.mrf.mxu0
    %v1056 = vadd.f32 %v837, %v1055
    %1057 = vmatmul.bf16.gmra.mxu0 %v810
    %v1058 = vpop.f32.mrf.mxu0
    %v1059 = vadd.f32 %v837, %v1058
    %v1060 = vpop.f32.mrf.mxu0
    %v1061 = vadd.f32 %v837, %v1060
    %1062 = vmatmul.bf16.gmra.mxu0 %v811
    %v1063 = vpop.f32.mrf.mxu0
    %v1064 = vadd.f32 %v837, %v1063
    %v1065 = vpop.f32.mrf.mxu0
    %v1066 = vadd.f32 %v837, %v1065
    %1067 = vmatmul.bf16.gmra.mxu0 %v812
    %v1068 = vpop.f32.mrf.mxu0
    %v1069 = vadd.f32 %v837, %v1068
    %v1070 = vpop.f32.mrf.mxu0
    %v1071 = vadd.f32 %v837, %v1070
    %1072 = vmatmul.bf16.gmra.mxu0 %v813
    %v1073 = vpop.f32.mrf.mxu0
    %v1074 = vadd.f32 %v837, %v1073
    %v1075 = vpop.f32.mrf.mxu0
    %v1076 = vadd.f32 %v837, %v1075
    %1077 = vmatmul.bf16.gmra.mxu0 %v814
    %v1078 = vpop.f32.mrf.mxu0
    %v1079 = vadd.f32 %v837, %v1078
    %v1080 = vpop.f32.mrf.mxu0
    %v1081 = vadd.f32 %v837, %v1080
    %1082 = vmatmul.bf16.gmra.mxu0 %v815
    %v1083 = vpop.f32.mrf.mxu0
    %v1084 = vadd.f32 %v837, %v1083
    %v1085 = vpop.f32.mrf.mxu0
    %v1086 = vadd.f32 %v837, %v1085
    %1087 = vmatmul.bf16.gmra.mxu0 %v816
    %v1088 = vpop.f32.mrf.mxu0
    %v1089 = vadd.f32 %v837, %v1088
    %v1090 = vpop.f32.mrf.mxu0
    %v1091 = vadd.f32 %v837, %v1090
    %1092 = vmatmul.bf16.gmra.mxu0 %v817
    %v1093 = vpop.f32.mrf.mxu0
    %v1094 = vadd.f32 %v837, %v1093
    %v1095 = vpop.f32.mrf.mxu0
    %v1096 = vadd.f32 %v837, %v1095
    %1097 = vdwg.mxu0
    %v1098 = vmax.f32 %v930, 0.0
    %v1099 = vmax.f32 %v1019, 0.0
    %v1100 = vmax.f32 %v932, 0.0
    %v1101 = vmax.f32 %v1021, 0.0
    %v1102 = vmax.f32 %v935, 0.0
    %v1103 = vmax.f32 %v1024, 0.0
    %v1104 = vmax.f32 %v937, 0.0
    %v1105 = vmax.f32 %v1026, 0.0
    %v1106 = vmax.f32 %v940, 0.0
    %v1107 = vmax.f32 %v1029, 0.0
    %v1108 = vmax.f32 %v942, 0.0
    %v1109 = vmax.f32 %v1031, 0.0
    %v1110 = vmax.f32 %v945, 0.0
    %v1111 = vmax.f32 %v1034, 0.0
    %v1112 = vmax.f32 %v947, 0.0
    %v1113 = vmax.f32 %v1036, 0.0
    %v1114 = vmax.f32 %v950, 0.0
    %v1115 = vmax.f32 %v1039, 0.0
    %v1116 = vmax.f32 %v952, 0.0
    %v1117 = vmax.f32 %v1041, 0.0
    %v1118 = vmax.f32 %v955, 0.0
    %v1119 = vmax.f32 %v1044, 0.0
    %v1120 = vmax.f32 %v957, 0.0
    %v1121 = vmax.f32 %v1046, 0.0
    %v1122 = vmax.f32 %v960, 0.0
    %v1123 = vmax.f32 %v1049, 0.0
    %v1124 = vmax.f32 %v962, 0.0
    %v1125 = vmax.f32 %v1051, 0.0
    %v1126 = vmax.f32 %v965, 0.0
    %v1127 = vmax.f32 %v1054, 0.0
    %v1128 = vmax.f32 %v967, 0.0
    %v1129 = vmax.f32 %v1056, 0.0
    %v1130 = vmax.f32 %v970, 0.0
    %v1131 = vmax.f32 %v1059, 0.0
    %v1132 = vmax.f32 %v972, 0.0
    %v1133 = vmax.f32 %v1061, 0.0
    %v1134 = vmax.f32 %v975, 0.0
    %v1135 = vmax.f32 %v1064, 0.0
    %v1136 = vmax.f32 %v977, 0.0
    %v1137 = vmax.f32 %v1066, 0.0
    %v1138 = vmax.f32 %v980, 0.0
    %v1139 = vmax.f32 %v1069, 0.0
    %v1140 = vmax.f32 %v982, 0.0
    %v1141 = vmax.f32 %v1071, 0.0
    %v1142 = vmax.f32 %v985, 0.0
    %v1143 = vmax.f32 %v1074, 0.0
    %v1144 = vmax.f32 %v987, 0.0
    %v1145 = vmax.f32 %v1076, 0.0
    %v1146 = vmax.f32 %v990, 0.0
    %v1147 = vmax.f32 %v1079, 0.0
    %v1148 = vmax.f32 %v992, 0.0
    %v1149 = vmax.f32 %v1081, 0.0
    %v1150 = vmax.f32 %v995, 0.0
    %v1151 = vmax.f32 %v1084, 0.0
    %v1152 = vmax.f32 %v997, 0.0
    %v1153 = vmax.f32 %v1086, 0.0
    %v1154 = vmax.f32 %v1000, 0.0
    %v1155 = vmax.f32 %v1089, 0.0
    %v1156 = vmax.f32 %v1002, 0.0
    %v1157 = vmax.f32 %v1091, 0.0
    %v1158 = vmax.f32 %v1005, 0.0
    %v1159 = vmax.f32 %v1094, 0.0
    %v1160 = vmax.f32 %v1007, 0.0
    %v1161 = vmax.f32 %v1096, 0.0
    %v1162 = vpack.c.bf16 %v1099, %v1098
    %v1163 = vpack.c.bf16 %v1101, %v1100
    %v1164 = vpack.c.bf16 %v1103, %v1102
    %v1165 = vpack.c.bf16 %v1105, %v1104
    %v1166 = vpack.c.bf16 %v1107, %v1106
    %v1167 = vpack.c.bf16 %v1109, %v1108
    %v1168 = vpack.c.bf16 %v1111, %v1110
    %v1169 = vpack.c.bf16 %v1113, %v1112
    %v1170 = vpack.c.bf16 %v1115, %v1114
    %v1171 = vpack.c.bf16 %v1117, %v1116
    %v1172 = vpack.c.bf16 %v1119, %v1118
    %v1173 = vpack.c.bf16 %v1121, %v1120
    %v1174 = vpack.c.bf16 %v1123, %v1122
    %v1175 = vpack.c.bf16 %v1125, %v1124
    %v1176 = vpack.c.bf16 %v1127, %v1126
    %v1177 = vpack.c.bf16 %v1129, %v1128
    %v1178 = vpack.c.bf16 %v1131, %v1130
    %v1179 = vpack.c.bf16 %v1133, %v1132
    %v1180 = vpack.c.bf16 %v1135, %v1134
    %v1181 = vpack.c.bf16 %v1137, %v1136
    %v1182 = vpack.c.bf16 %v1139, %v1138
    %v1183 = vpack.c.bf16 %v1141, %v1140
    %v1184 = vpack.c.bf16 %v1143, %v1142
    %v1185 = vpack.c.bf16 %v1145, %v1144
    %v1186 = vpack.c.bf16 %v1147, %v1146
    %v1187 = vpack.c.bf16 %v1149, %v1148
    %v1188 = vpack.c.bf16 %v1151, %v1150
    %v1189 = vpack.c.bf16 %v1153, %v1152
    %v1190 = vpack.c.bf16 %v1155, %v1154
    %v1191 = vpack.c.bf16 %v1157, %v1156
    %v1192 = vpack.c.bf16 %v1159, %v1158
    %v1193 = vpack.c.bf16 %v1161, %v1160
    %v1194 = vunpack.c.l.bf16 %v1162
    %v1195 = vunpack.c.h.bf16 %v1162
    %v1196 = vunpack.c.l.bf16 %v1163
    %v1197 = vunpack.c.h.bf16 %v1163
    %v1198 = vunpack.c.l.bf16 %v1164
    %v1199 = vunpack.c.h.bf16 %v1164
    %v1200 = vunpack.c.l.bf16 %v1165
    %v1201 = vunpack.c.h.bf16 %v1165
    %v1202 = vunpack.c.l.bf16 %v1166
    %v1203 = vunpack.c.h.bf16 %v1166
    %v1204 = vunpack.c.l.bf16 %v1167
    %v1205 = vunpack.c.h.bf16 %v1167
    %v1206 = vunpack.c.l.bf16 %v1168
    %v1207 = vunpack.c.h.bf16 %v1168
    %v1208 = vunpack.c.l.bf16 %v1169
    %v1209 = vunpack.c.h.bf16 %v1169
    %v1210 = vunpack.c.l.bf16 %v1170
    %v1211 = vunpack.c.h.bf16 %v1170
    %v1212 = vunpack.c.l.bf16 %v1171
    %v1213 = vunpack.c.h.bf16 %v1171
    %v1214 = vunpack.c.l.bf16 %v1172
    %v1215 = vunpack.c.h.bf16 %v1172
    %v1216 = vunpack.c.l.bf16 %v1173
    %v1217 = vunpack.c.h.bf16 %v1173
    %v1218 = vunpack.c.l.bf16 %v1174
    %v1219 = vunpack.c.h.bf16 %v1174
    %v1220 = vunpack.c.l.bf16 %v1175
    %v1221 = vunpack.c.h.bf16 %v1175
    %v1222 = vunpack.c.l.bf16 %v1176
    %v1223 = vunpack.c.h.bf16 %v1176
    %v1224 = vunpack.c.l.bf16 %v1177
    %v1225 = vunpack.c.h.bf16 %v1177
    %v1226 = vunpack.c.l.bf16 %v1178
    %v1227 = vunpack.c.h.bf16 %v1178
    %v1228 = vunpack.c.l.bf16 %v1179
    %v1229 = vunpack.c.h.bf16 %v1179
    %v1230 = vunpack.c.l.bf16 %v1180
    %v1231 = vunpack.c.h.bf16 %v1180
    %v1232 = vunpack.c.l.bf16 %v1181
    %v1233 = vunpack.c.h.bf16 %v1181
    %v1234 = vunpack.c.l.bf16 %v1182
    %v1235 = vunpack.c.h.bf16 %v1182
    %v1236 = vunpack.c.l.bf16 %v1183
    %v1237 = vunpack.c.h.bf16 %v1183
    %v1238 = vunpack.c.l.bf16 %v1184
    %v1239 = vunpack.c.h.bf16 %v1184
    %v1240 = vunpack.c.l.bf16 %v1185
    %v1241 = vunpack.c.h.bf16 %v1185
    %v1242 = vunpack.c.l.bf16 %v1186
    %v1243 = vunpack.c.h.bf16 %v1186
    %v1244 = vunpack.c.l.bf16 %v1187
    %v1245 = vunpack.c.h.bf16 %v1187
    %v1246 = vunpack.c.l.bf16 %v1188
    %v1247 = vunpack.c.h.bf16 %v1188
    %v1248 = vunpack.c.l.bf16 %v1189
    %v1249 = vunpack.c.h.bf16 %v1189
    %v1250 = vunpack.c.l.bf16 %v1190
    %v1251 = vunpack.c.h.bf16 %v1190
    %v1252 = vunpack.c.l.bf16 %v1191
    %v1253 = vunpack.c.h.bf16 %v1191
    %v1254 = vunpack.c.l.bf16 %v1192
    %v1255 = vunpack.c.h.bf16 %v1192
    %v1256 = vunpack.c.l.bf16 %v1193
    %v1257 = vunpack.c.h.bf16 %v1193
    %v1258 = vmul.f32 %v1194, %v227
    %v1259 = vmul.f32 %v1195, %v227
    %v1260 = vmul.f32 %v1196, %v232
    %v1261 = vmul.f32 %v1197, %v232
    %v1262 = vmul.f32 %v1198, %v237
    %v1263 = vmul.f32 %v1199, %v237
    %v1264 = vmul.f32 %v1200, %v242
    %v1265 = vmul.f32 %v1201, %v242
    %v1266 = vmul.f32 %v1202, %v247
    %v1267 = vmul.f32 %v1203, %v247
    %v1268 = vmul.f32 %v1204, %v252
    %v1269 = vmul.f32 %v1205, %v252
    %v1270 = vmul.f32 %v1206, %v257
    %v1271 = vmul.f32 %v1207, %v257
    %v1272 = vmul.f32 %v1208, %v262
    %v1273 = vmul.f32 %v1209, %v262
    %v1274 = vmul.f32 %v1210, %v267
    %v1275 = vmul.f32 %v1211, %v267
    %v1276 = vmul.f32 %v1212, %v272
    %v1277 = vmul.f32 %v1213, %v272
    %v1278 = vmul.f32 %v1214, %v277
    %v1279 = vmul.f32 %v1215, %v277
    %v1280 = vmul.f32 %v1216, %v282
    %v1281 = vmul.f32 %v1217, %v282
    %v1282 = vmul.f32 %v1218, %v287
    %v1283 = vmul.f32 %v1219, %v287
    %v1284 = vmul.f32 %v1220, %v292
    %v1285 = vmul.f32 %v1221, %v292
    %v1286 = vmul.f32 %v1222, %v297
    %v1287 = vmul.f32 %v1223, %v297
    %v1288 = vmul.f32 %v1224, %v302
    %v1289 = vmul.f32 %v1225, %v302
    %v1290 = vmul.f32 %v1226, %v307
    %v1291 = vmul.f32 %v1227, %v307
    %v1292 = vmul.f32 %v1228, %v312
    %v1293 = vmul.f32 %v1229, %v312
    %v1294 = vmul.f32 %v1230, %v317
    %v1295 = vmul.f32 %v1231, %v317
    %v1296 = vmul.f32 %v1232, %v322
    %v1297 = vmul.f32 %v1233, %v322
    %v1298 = vmul.f32 %v1234, %v327
    %v1299 = vmul.f32 %v1235, %v327
    %v1300 = vmul.f32 %v1236, %v332
    %v1301 = vmul.f32 %v1237, %v332
    %v1302 = vmul.f32 %v1238, %v337
    %v1303 = vmul.f32 %v1239, %v337
    %v1304 = vmul.f32 %v1240, %v342
    %v1305 = vmul.f32 %v1241, %v342
    %v1306 = vmul.f32 %v1242, %v347
    %v1307 = vmul.f32 %v1243, %v347
    %v1308 = vmul.f32 %v1244, %v352
    %v1309 = vmul.f32 %v1245, %v352
    %v1310 = vmul.f32 %v1246, %v357
    %v1311 = vmul.f32 %v1247, %v357
    %v1312 = vmul.f32 %v1248, %v362
    %v1313 = vmul.f32 %v1249, %v362
    %v1314 = vmul.f32 %v1250, %v367
    %v1315 = vmul.f32 %v1251, %v367
    %v1316 = vmul.f32 %v1252, %v372
    %v1317 = vmul.f32 %v1253, %v372
    %v1318 = vmul.f32 %v1254, %v377
    %v1319 = vmul.f32 %v1255, %v377
    %v1320 = vmul.f32 %v1256, %v382
    %v1321 = vmul.f32 %v1257, %v382
    %v1322 = vpack.c.bf16 %v1260, %v1258
    %v1323 = vpack.c.bf16 %v1261, %v1259
    %v1324 = vpack.c.bf16 %v1264, %v1262
    %v1325 = vpack.c.bf16 %v1265, %v1263
    %v1326 = vpack.c.bf16 %v1268, %v1266
    %v1327 = vpack.c.bf16 %v1269, %v1267
    %v1328 = vpack.c.bf16 %v1272, %v1270
    %v1329 = vpack.c.bf16 %v1273, %v1271
    %v1330 = vpack.c.bf16 %v1276, %v1274
    %v1331 = vpack.c.bf16 %v1277, %v1275
    %v1332 = vpack.c.bf16 %v1280, %v1278
    %v1333 = vpack.c.bf16 %v1281, %v1279
    %v1334 = vpack.c.bf16 %v1284, %v1282
    %v1335 = vpack.c.bf16 %v1285, %v1283
    %v1336 = vpack.c.bf16 %v1288, %v1286
    %v1337 = vpack.c.bf16 %v1289, %v1287
    %v1338 = vpack.c.bf16 %v1292, %v1290
    %v1339 = vpack.c.bf16 %v1293, %v1291
    %v1340 = vpack.c.bf16 %v1296, %v1294
    %v1341 = vpack.c.bf16 %v1297, %v1295
    %v1342 = vpack.c.bf16 %v1300, %v1298
    %v1343 = vpack.c.bf16 %v1301, %v1299
    %v1344 = vpack.c.bf16 %v1304, %v1302
    %v1345 = vpack.c.bf16 %v1305, %v1303
    %v1346 = vpack.c.bf16 %v1308, %v1306
    %v1347 = vpack.c.bf16 %v1309, %v1307
    %v1348 = vpack.c.bf16 %v1312, %v1310
    %v1349 = vpack.c.bf16 %v1313, %v1311
    %v1350 = vpack.c.bf16 %v1316, %v1314
    %v1351 = vpack.c.bf16 %v1317, %v1315
    %v1352 = vpack.c.bf16 %v1320, %v1318
    %v1353 = vpack.c.bf16 %v1321, %v1319
    %1354 = vmatpush.bf16.msra.mxu0 %v1336
    %1355 = vmatpush.bf16.msra.mxu0 %v1334
    %1356 = vmatpush.bf16.msra.mxu0 %v1332
    %1357 = vmatpush.bf16.msra.mxu0 %v1330
    %1358 = vmatpush.bf16.msra.mxu0 %v1328
    %1359 = vmatpush.bf16.msra.mxu0 %v1326
    %1360 = vmatpush.bf16.msra.mxu0 %v1324
    %1361 = vmatpush.bf16.msra.mxu0 %v1322
    %1362 = vmatmul.bf16.gmra.mxu0 %v528
    %v1363 = vpop.f32.mrf.mxu0
    %v1364 = vadd.f32 0.0, %v1363
    %v1365 = vpop.f32.mrf.mxu0
    %v1366 = vadd.f32 0.0, %v1365
    %1367 = vmatmul.bf16.gmra.mxu0 %v530
    %v1368 = vpop.f32.mrf.mxu0
    %v1369 = vadd.f32 0.0, %v1368
    %v1370 = vpop.f32.mrf.mxu0
    %v1371 = vadd.f32 0.0, %v1370
    %1372 = vmatmul.bf16.gmra.mxu0 %v532
    %v1373 = vpop.f32.mrf.mxu0
    %v1374 = vadd.f32 0.0, %v1373
    %v1375 = vpop.f32.mrf.mxu0
    %v1376 = vadd.f32 0.0, %v1375
    %1377 = vmatmul.bf16.gmra.mxu0 %v534
    %v1378 = vpop.f32.mrf.mxu0
    %v1379 = vadd.f32 0.0, %v1378
    %v1380 = vpop.f32.mrf.mxu0
    %v1381 = vadd.f32 0.0, %v1380
    %1382 = vmatmul.bf16.gmra.mxu0 %v536
    %v1383 = vpop.f32.mrf.mxu0
    %v1384 = vadd.f32 0.0, %v1383
    %v1385 = vpop.f32.mrf.mxu0
    %v1386 = vadd.f32 0.0, %v1385
    %1387 = vmatmul.bf16.gmra.mxu0 %v538
    %v1388 = vpop.f32.mrf.mxu0
    %v1389 = vadd.f32 0.0, %v1388
    %v1390 = vpop.f32.mrf.mxu0
    %v1391 = vadd.f32 0.0, %v1390
    %1392 = vmatmul.bf16.gmra.mxu0 %v540
    %v1393 = vpop.f32.mrf.mxu0
    %v1394 = vadd.f32 0.0, %v1393
    %v1395 = vpop.f32.mrf.mxu0
    %v1396 = vadd.f32 0.0, %v1395
    %1397 = vmatmul.bf16.gmra.mxu0 %v542
    %v1398 = vpop.f32.mrf.mxu0
    %v1399 = vadd.f32 0.0, %v1398
    %v1400 = vpop.f32.mrf.mxu0
    %v1401 = vadd.f32 0.0, %v1400
    %1402 = vmatmul.bf16.gmra.mxu0 %v544
    %v1403 = vpop.f32.mrf.mxu0
    %v1404 = vadd.f32 0.0, %v1403
    %v1405 = vpop.f32.mrf.mxu0
    %v1406 = vadd.f32 0.0, %v1405
    %1407 = vmatmul.bf16.gmra.mxu0 %v546
    %v1408 = vpop.f32.mrf.mxu0
    %v1409 = vadd.f32 0.0, %v1408
    %v1410 = vpop.f32.mrf.mxu0
    %v1411 = vadd.f32 0.0, %v1410
    %1412 = vmatmul.bf16.gmra.mxu0 %v548
    %v1413 = vpop.f32.mrf.mxu0
    %v1414 = vadd.f32 0.0, %v1413
    %v1415 = vpop.f32.mrf.mxu0
    %v1416 = vadd.f32 0.0, %v1415
    %1417 = vmatmul.bf16.gmra.mxu0 %v550
    %v1418 = vpop.f32.mrf.mxu0
    %v1419 = vadd.f32 0.0, %v1418
    %v1420 = vpop.f32.mrf.mxu0
    %v1421 = vadd.f32 0.0, %v1420
    %1422 = vmatmul.bf16.gmra.mxu0 %v552
    %v1423 = vpop.f32.mrf.mxu0
    %v1424 = vadd.f32 0.0, %v1423
    %v1425 = vpop.f32.mrf.mxu0
    %v1426 = vadd.f32 0.0, %v1425
    %1427 = vmatmul.bf16.gmra.mxu0 %v554
    %v1428 = vpop.f32.mrf.mxu0
    %v1429 = vadd.f32 0.0, %v1428
    %v1430 = vpop.f32.mrf.mxu0
    %v1431 = vadd.f32 0.0, %v1430
    %1432 = vmatmul.bf16.gmra.mxu0 %v556
    %v1433 = vpop.f32.mrf.mxu0
    %v1434 = vadd.f32 0.0, %v1433
    %v1435 = vpop.f32.mrf.mxu0
    %v1436 = vadd.f32 0.0, %v1435
    %1437 = vmatmul.bf16.gmra.mxu0 %v558
    %v1438 = vpop.f32.mrf.mxu0
    %v1439 = vadd.f32 0.0, %v1438
    %v1440 = vpop.f32.mrf.mxu0
    %v1441 = vadd.f32 0.0, %v1440
    %1442 = vdwg.mxu0
    %1443 = vmatpush.bf16.msra.mxu0 %v1352
    %1444 = vmatpush.bf16.msra.mxu0 %v1350
    %1445 = vmatpush.bf16.msra.mxu0 %v1348
    %1446 = vmatpush.bf16.msra.mxu0 %v1346
    %1447 = vmatpush.bf16.msra.mxu0 %v1344
    %1448 = vmatpush.bf16.msra.mxu0 %v1342
    %1449 = vmatpush.bf16.msra.mxu0 %v1340
    %1450 = vmatpush.bf16.msra.mxu0 %v1338
    %1451 = vmatmul.bf16.gmra.mxu0 %v529
    %v1452 = vpop.f32.mrf.mxu0
    %v1453 = vadd.f32 %v1364, %v1452
    %v1454 = vpop.f32.mrf.mxu0
    %v1455 = vadd.f32 %v1366, %v1454
    %1456 = vmatmul.bf16.gmra.mxu0 %v531
    %v1457 = vpop.f32.mrf.mxu0
    %v1458 = vadd.f32 %v1369, %v1457
    %v1459 = vpop.f32.mrf.mxu0
    %v1460 = vadd.f32 %v1371, %v1459
    %1461 = vmatmul.bf16.gmra.mxu0 %v533
    %v1462 = vpop.f32.mrf.mxu0
    %v1463 = vadd.f32 %v1374, %v1462
    %v1464 = vpop.f32.mrf.mxu0
    %v1465 = vadd.f32 %v1376, %v1464
    %1466 = vmatmul.bf16.gmra.mxu0 %v535
    %v1467 = vpop.f32.mrf.mxu0
    %v1468 = vadd.f32 %v1379, %v1467
    %v1469 = vpop.f32.mrf.mxu0
    %v1470 = vadd.f32 %v1381, %v1469
    %1471 = vmatmul.bf16.gmra.mxu0 %v537
    %v1472 = vpop.f32.mrf.mxu0
    %v1473 = vadd.f32 %v1384, %v1472
    %v1474 = vpop.f32.mrf.mxu0
    %v1475 = vadd.f32 %v1386, %v1474
    %1476 = vmatmul.bf16.gmra.mxu0 %v539
    %v1477 = vpop.f32.mrf.mxu0
    %v1478 = vadd.f32 %v1389, %v1477
    %v1479 = vpop.f32.mrf.mxu0
    %v1480 = vadd.f32 %v1391, %v1479
    %1481 = vmatmul.bf16.gmra.mxu0 %v541
    %v1482 = vpop.f32.mrf.mxu0
    %v1483 = vadd.f32 %v1394, %v1482
    %v1484 = vpop.f32.mrf.mxu0
    %v1485 = vadd.f32 %v1396, %v1484
    %1486 = vmatmul.bf16.gmra.mxu0 %v543
    %v1487 = vpop.f32.mrf.mxu0
    %v1488 = vadd.f32 %v1399, %v1487
    %v1489 = vpop.f32.mrf.mxu0
    %v1490 = vadd.f32 %v1401, %v1489
    %1491 = vmatmul.bf16.gmra.mxu0 %v545
    %v1492 = vpop.f32.mrf.mxu0
    %v1493 = vadd.f32 %v1404, %v1492
    %v1494 = vpop.f32.mrf.mxu0
    %v1495 = vadd.f32 %v1406, %v1494
    %1496 = vmatmul.bf16.gmra.mxu0 %v547
    %v1497 = vpop.f32.mrf.mxu0
    %v1498 = vadd.f32 %v1409, %v1497
    %v1499 = vpop.f32.mrf.mxu0
    %v1500 = vadd.f32 %v1411, %v1499
    %1501 = vmatmul.bf16.gmra.mxu0 %v549
    %v1502 = vpop.f32.mrf.mxu0
    %v1503 = vadd.f32 %v1414, %v1502
    %v1504 = vpop.f32.mrf.mxu0
    %v1505 = vadd.f32 %v1416, %v1504
    %1506 = vmatmul.bf16.gmra.mxu0 %v551
    %v1507 = vpop.f32.mrf.mxu0
    %v1508 = vadd.f32 %v1419, %v1507
    %v1509 = vpop.f32.mrf.mxu0
    %v1510 = vadd.f32 %v1421, %v1509
    %1511 = vmatmul.bf16.gmra.mxu0 %v553
    %v1512 = vpop.f32.mrf.mxu0
    %v1513 = vadd.f32 %v1424, %v1512
    %v1514 = vpop.f32.mrf.mxu0
    %v1515 = vadd.f32 %v1426, %v1514
    %1516 = vmatmul.bf16.gmra.mxu0 %v555
    %v1517 = vpop.f32.mrf.mxu0
    %v1518 = vadd.f32 %v1429, %v1517
    %v1519 = vpop.f32.mrf.mxu0
    %v1520 = vadd.f32 %v1431, %v1519
    %1521 = vmatmul.bf16.gmra.mxu0 %v557
    %v1522 = vpop.f32.mrf.mxu0
    %v1523 = vadd.f32 %v1434, %v1522
    %v1524 = vpop.f32.mrf.mxu0
    %v1525 = vadd.f32 %v1436, %v1524
    %1526 = vmatmul.bf16.gmra.mxu0 %v559
    %v1527 = vpop.f32.mrf.mxu0
    %v1528 = vadd.f32 %v1439, %v1527
    %v1529 = vpop.f32.mrf.mxu0
    %v1530 = vadd.f32 %v1441, %v1529
    %1531 = vdwg.mxu0
    %1532 = vmatpush.bf16.msra.mxu0 %v1337
    %1533 = vmatpush.bf16.msra.mxu0 %v1335
    %1534 = vmatpush.bf16.msra.mxu0 %v1333
    %1535 = vmatpush.bf16.msra.mxu0 %v1331
    %1536 = vmatpush.bf16.msra.mxu0 %v1329
    %1537 = vmatpush.bf16.msra.mxu0 %v1327
    %1538 = vmatpush.bf16.msra.mxu0 %v1325
    %1539 = vmatpush.bf16.msra.mxu0 %v1323
    %1540 = vmatmul.bf16.gmra.mxu0 %v528
    %v1541 = vpop.f32.mrf.mxu0
    %v1542 = vadd.f32 0.0, %v1541
    %v1543 = vpop.f32.mrf.mxu0
    %v1544 = vadd.f32 0.0, %v1543
    %1545 = vmatmul.bf16.gmra.mxu0 %v530
    %v1546 = vpop.f32.mrf.mxu0
    %v1547 = vadd.f32 0.0, %v1546
    %v1548 = vpop.f32.mrf.mxu0
    %v1549 = vadd.f32 0.0, %v1548
    %1550 = vmatmul.bf16.gmra.mxu0 %v532
    %v1551 = vpop.f32.mrf.mxu0
    %v1552 = vadd.f32 0.0, %v1551
    %v1553 = vpop.f32.mrf.mxu0
    %v1554 = vadd.f32 0.0, %v1553
    %1555 = vmatmul.bf16.gmra.mxu0 %v534
    %v1556 = vpop.f32.mrf.mxu0
    %v1557 = vadd.f32 0.0, %v1556
    %v1558 = vpop.f32.mrf.mxu0
    %v1559 = vadd.f32 0.0, %v1558
    %1560 = vmatmul.bf16.gmra.mxu0 %v536
    %v1561 = vpop.f32.mrf.mxu0
    %v1562 = vadd.f32 0.0, %v1561
    %v1563 = vpop.f32.mrf.mxu0
    %v1564 = vadd.f32 0.0, %v1563
    %1565 = vmatmul.bf16.gmra.mxu0 %v538
    %v1566 = vpop.f32.mrf.mxu0
    %v1567 = vadd.f32 0.0, %v1566
    %v1568 = vpop.f32.mrf.mxu0
    %v1569 = vadd.f32 0.0, %v1568
    %1570 = vmatmul.bf16.gmra.mxu0 %v540
    %v1571 = vpop.f32.mrf.mxu0
    %v1572 = vadd.f32 0.0, %v1571
    %v1573 = vpop.f32.mrf.mxu0
    %v1574 = vadd.f32 0.0, %v1573
    %1575 = vmatmul.bf16.gmra.mxu0 %v542
    %v1576 = vpop.f32.mrf.mxu0
    %v1577 = vadd.f32 0.0, %v1576
    %v1578 = vpop.f32.mrf.mxu0
    %v1579 = vadd.f32 0.0, %v1578
    %1580 = vmatmul.bf16.gmra.mxu0 %v544
    %v1581 = vpop.f32.mrf.mxu0
    %v1582 = vadd.f32 0.0, %v1581
    %v1583 = vpop.f32.mrf.mxu0
    %v1584 = vadd.f32 0.0, %v1583
    %1585 = vmatmul.bf16.gmra.mxu0 %v546
    %v1586 = vpop.f32.mrf.mxu0
    %v1587 = vadd.f32 0.0, %v1586
    %v1588 = vpop.f32.mrf.mxu0
    %v1589 = vadd.f32 0.0, %v1588
    %1590 = vmatmul.bf16.gmra.mxu0 %v548
    %v1591 = vpop.f32.mrf.mxu0
    %v1592 = vadd.f32 0.0, %v1591
    %v1593 = vpop.f32.mrf.mxu0
    %v1594 = vadd.f32 0.0, %v1593
    %1595 = vmatmul.bf16.gmra.mxu0 %v550
    %v1596 = vpop.f32.mrf.mxu0
    %v1597 = vadd.f32 0.0, %v1596
    %v1598 = vpop.f32.mrf.mxu0
    %v1599 = vadd.f32 0.0, %v1598
    %1600 = vmatmul.bf16.gmra.mxu0 %v552
    %v1601 = vpop.f32.mrf.mxu0
    %v1602 = vadd.f32 0.0, %v1601
    %v1603 = vpop.f32.mrf.mxu0
    %v1604 = vadd.f32 0.0, %v1603
    %1605 = vmatmul.bf16.gmra.mxu0 %v554
    %v1606 = vpop.f32.mrf.mxu0
    %v1607 = vadd.f32 0.0, %v1606
    %v1608 = vpop.f32.mrf.mxu0
    %v1609 = vadd.f32 0.0, %v1608
    %1610 = vmatmul.bf16.gmra.mxu0 %v556
    %v1611 = vpop.f32.mrf.mxu0
    %v1612 = vadd.f32 0.0, %v1611
    %v1613 = vpop.f32.mrf.mxu0
    %v1614 = vadd.f32 0.0, %v1613
    %1615 = vmatmul.bf16.gmra.mxu0 %v558
    %v1616 = vpop.f32.mrf.mxu0
    %v1617 = vadd.f32 0.0, %v1616
    %v1618 = vpop.f32.mrf.mxu0
    %v1619 = vadd.f32 0.0, %v1618
    %1620 = vdwg.mxu0
    %1621 = vmatpush.bf16.msra.mxu0 %v1353
    %1622 = vmatpush.bf16.msra.mxu0 %v1351
    %1623 = vmatpush.bf16.msra.mxu0 %v1349
    %1624 = vmatpush.bf16.msra.mxu0 %v1347
    %1625 = vmatpush.bf16.msra.mxu0 %v1345
    %1626 = vmatpush.bf16.msra.mxu0 %v1343
    %1627 = vmatpush.bf16.msra.mxu0 %v1341
    %1628 = vmatpush.bf16.msra.mxu0 %v1339
    %1629 = vmatmul.bf16.gmra.mxu0 %v529
    %v1630 = vpop.f32.mrf.mxu0
    %v1631 = vadd.f32 %v1542, %v1630
    %v1632 = vpop.f32.mrf.mxu0
    %v1633 = vadd.f32 %v1544, %v1632
    %1634 = vmatmul.bf16.gmra.mxu0 %v531
    %v1635 = vpop.f32.mrf.mxu0
    %v1636 = vadd.f32 %v1547, %v1635
    %v1637 = vpop.f32.mrf.mxu0
    %v1638 = vadd.f32 %v1549, %v1637
    %1639 = vmatmul.bf16.gmra.mxu0 %v533
    %v1640 = vpop.f32.mrf.mxu0
    %v1641 = vadd.f32 %v1552, %v1640
    %v1642 = vpop.f32.mrf.mxu0
    %v1643 = vadd.f32 %v1554, %v1642
    %1644 = vmatmul.bf16.gmra.mxu0 %v535
    %v1645 = vpop.f32.mrf.mxu0
    %v1646 = vadd.f32 %v1557, %v1645
    %v1647 = vpop.f32.mrf.mxu0
    %v1648 = vadd.f32 %v1559, %v1647
    %1649 = vmatmul.bf16.gmra.mxu0 %v537
    %v1650 = vpop.f32.mrf.mxu0
    %v1651 = vadd.f32 %v1562, %v1650
    %v1652 = vpop.f32.mrf.mxu0
    %v1653 = vadd.f32 %v1564, %v1652
    %1654 = vmatmul.bf16.gmra.mxu0 %v539
    %v1655 = vpop.f32.mrf.mxu0
    %v1656 = vadd.f32 %v1567, %v1655
    %v1657 = vpop.f32.mrf.mxu0
    %v1658 = vadd.f32 %v1569, %v1657
    %1659 = vmatmul.bf16.gmra.mxu0 %v541
    %v1660 = vpop.f32.mrf.mxu0
    %v1661 = vadd.f32 %v1572, %v1660
    %v1662 = vpop.f32.mrf.mxu0
    %v1663 = vadd.f32 %v1574, %v1662
    %1664 = vmatmul.bf16.gmra.mxu0 %v543
    %v1665 = vpop.f32.mrf.mxu0
    %v1666 = vadd.f32 %v1577, %v1665
    %v1667 = vpop.f32.mrf.mxu0
    %v1668 = vadd.f32 %v1579, %v1667
    %1669 = vmatmul.bf16.gmra.mxu0 %v545
    %v1670 = vpop.f32.mrf.mxu0
    %v1671 = vadd.f32 %v1582, %v1670
    %v1672 = vpop.f32.mrf.mxu0
    %v1673 = vadd.f32 %v1584, %v1672
    %1674 = vmatmul.bf16.gmra.mxu0 %v547
    %v1675 = vpop.f32.mrf.mxu0
    %v1676 = vadd.f32 %v1587, %v1675
    %v1677 = vpop.f32.mrf.mxu0
    %v1678 = vadd.f32 %v1589, %v1677
    %1679 = vmatmul.bf16.gmra.mxu0 %v549
    %v1680 = vpop.f32.mrf.mxu0
    %v1681 = vadd.f32 %v1592, %v1680
    %v1682 = vpop.f32.mrf.mxu0
    %v1683 = vadd.f32 %v1594, %v1682
    %1684 = vmatmul.bf16.gmra.mxu0 %v551
    %v1685 = vpop.f32.mrf.mxu0
    %v1686 = vadd.f32 %v1597, %v1685
    %v1687 = vpop.f32.mrf.mxu0
    %v1688 = vadd.f32 %v1599, %v1687
    %1689 = vmatmul.bf16.gmra.mxu0 %v553
    %v1690 = vpop.f32.mrf.mxu0
    %v1691 = vadd.f32 %v1602, %v1690
    %v1692 = vpop.f32.mrf.mxu0
    %v1693 = vadd.f32 %v1604, %v1692
    %1694 = vmatmul.bf16.gmra.mxu0 %v555
    %v1695 = vpop.f32.mrf.mxu0
    %v1696 = vadd.f32 %v1607, %v1695
    %v1697 = vpop.f32.mrf.mxu0
    %v1698 = vadd.f32 %v1609, %v1697
    %1699 = vmatmul.bf16.gmra.mxu0 %v557
    %v1700 = vpop.f32.mrf.mxu0
    %v1701 = vadd.f32 %v1612, %v1700
    %v1702 = vpop.f32.mrf.mxu0
    %v1703 = vadd.f32 %v1614, %v1702
    %1704 = vmatmul.bf16.gmra.mxu0 %v559
    %v1705 = vpop.f32.mrf.mxu0
    %v1706 = vadd.f32 %v1617, %v1705
    %v1707 = vpop.f32.mrf.mxu0
    %v1708 = vadd.f32 %v1619, %v1707
    %1709 = vdwg.mxu0
    %v1710 = vmul.f32 %v1453, %v227
    %v1711 = vmul.f32 %v1631, %v227
    %v1712 = vmul.f32 %v1455, %v232
    %v1713 = vmul.f32 %v1633, %v232
    %v1714 = vmul.f32 %v1458, %v237
    %v1715 = vmul.f32 %v1636, %v237
    %v1716 = vmul.f32 %v1460, %v242
    %v1717 = vmul.f32 %v1638, %v242
    %v1718 = vmul.f32 %v1463, %v247
    %v1719 = vmul.f32 %v1641, %v247
    %v1720 = vmul.f32 %v1465, %v252
    %v1721 = vmul.f32 %v1643, %v252
    %v1722 = vmul.f32 %v1468, %v257
    %v1723 = vmul.f32 %v1646, %v257
    %v1724 = vmul.f32 %v1470, %v262
    %v1725 = vmul.f32 %v1648, %v262
    %v1726 = vmul.f32 %v1473, %v267
    %v1727 = vmul.f32 %v1651, %v267
    %v1728 = vmul.f32 %v1475, %v272
    %v1729 = vmul.f32 %v1653, %v272
    %v1730 = vmul.f32 %v1478, %v277
    %v1731 = vmul.f32 %v1656, %v277
    %v1732 = vmul.f32 %v1480, %v282
    %v1733 = vmul.f32 %v1658, %v282
    %v1734 = vmul.f32 %v1483, %v287
    %v1735 = vmul.f32 %v1661, %v287
    %v1736 = vmul.f32 %v1485, %v292
    %v1737 = vmul.f32 %v1663, %v292
    %v1738 = vmul.f32 %v1488, %v297
    %v1739 = vmul.f32 %v1666, %v297
    %v1740 = vmul.f32 %v1490, %v302
    %v1741 = vmul.f32 %v1668, %v302
    %v1742 = vmul.f32 %v1493, %v307
    %v1743 = vmul.f32 %v1671, %v307
    %v1744 = vmul.f32 %v1495, %v312
    %v1745 = vmul.f32 %v1673, %v312
    %v1746 = vmul.f32 %v1498, %v317
    %v1747 = vmul.f32 %v1676, %v317
    %v1748 = vmul.f32 %v1500, %v322
    %v1749 = vmul.f32 %v1678, %v322
    %v1750 = vmul.f32 %v1503, %v327
    %v1751 = vmul.f32 %v1681, %v327
    %v1752 = vmul.f32 %v1505, %v332
    %v1753 = vmul.f32 %v1683, %v332
    %v1754 = vmul.f32 %v1508, %v337
    %v1755 = vmul.f32 %v1686, %v337
    %v1756 = vmul.f32 %v1510, %v342
    %v1757 = vmul.f32 %v1688, %v342
    %v1758 = vmul.f32 %v1513, %v347
    %v1759 = vmul.f32 %v1691, %v347
    %v1760 = vmul.f32 %v1515, %v352
    %v1761 = vmul.f32 %v1693, %v352
    %v1762 = vmul.f32 %v1518, %v357
    %v1763 = vmul.f32 %v1696, %v357
    %v1764 = vmul.f32 %v1520, %v362
    %v1765 = vmul.f32 %v1698, %v362
    %v1766 = vmul.f32 %v1523, %v367
    %v1767 = vmul.f32 %v1701, %v367
    %v1768 = vmul.f32 %v1525, %v372
    %v1769 = vmul.f32 %v1703, %v372
    %v1770 = vmul.f32 %v1528, %v377
    %v1771 = vmul.f32 %v1706, %v377
    %v1772 = vmul.f32 %v1530, %v382
    %v1773 = vmul.f32 %v1708, %v382
    %v1774 = vpack.c.bf16 %v1712, %v1710
    %v1775 = vpack.c.bf16 %v1713, %v1711
    %v1776 = vpack.c.bf16 %v1716, %v1714
    %v1777 = vpack.c.bf16 %v1717, %v1715
    %v1778 = vpack.c.bf16 %v1720, %v1718
    %v1779 = vpack.c.bf16 %v1721, %v1719
    %v1780 = vpack.c.bf16 %v1724, %v1722
    %v1781 = vpack.c.bf16 %v1725, %v1723
    %v1782 = vpack.c.bf16 %v1728, %v1726
    %v1783 = vpack.c.bf16 %v1729, %v1727
    %v1784 = vpack.c.bf16 %v1732, %v1730
    %v1785 = vpack.c.bf16 %v1733, %v1731
    %v1786 = vpack.c.bf16 %v1736, %v1734
    %v1787 = vpack.c.bf16 %v1737, %v1735
    %v1788 = vpack.c.bf16 %v1740, %v1738
    %v1789 = vpack.c.bf16 %v1741, %v1739
    %v1790 = vpack.c.bf16 %v1744, %v1742
    %v1791 = vpack.c.bf16 %v1745, %v1743
    %v1792 = vpack.c.bf16 %v1748, %v1746
    %v1793 = vpack.c.bf16 %v1749, %v1747
    %v1794 = vpack.c.bf16 %v1752, %v1750
    %v1795 = vpack.c.bf16 %v1753, %v1751
    %v1796 = vpack.c.bf16 %v1756, %v1754
    %v1797 = vpack.c.bf16 %v1757, %v1755
    %v1798 = vpack.c.bf16 %v1760, %v1758
    %v1799 = vpack.c.bf16 %v1761, %v1759
    %v1800 = vpack.c.bf16 %v1764, %v1762
    %v1801 = vpack.c.bf16 %v1765, %v1763
    %v1802 = vpack.c.bf16 %v1768, %v1766
    %v1803 = vpack.c.bf16 %v1769, %v1767
    %v1804 = vpack.c.bf16 %v1772, %v1770
    %v1805 = vpack.c.bf16 %v1773, %v1771
    %v1806 = vld [vmem:[#allocation7] sm:$0xff]
    %v1807 = vld [vmem:[#allocation7 + $0x8] sm:$0xff]
    %v1808 = vld [vmem:[#allocation7 + $0x10] sm:$0xff]
    %v1809 = vld [vmem:[#allocation7 + $0x18] sm:$0xff]
    %v1810 = vld [vmem:[#allocation7 + $0x20] sm:$0xff]
    %v1811 = vld [vmem:[#allocation7 + $0x28] sm:$0xff]
    %v1812 = vld [vmem:[#allocation7 + $0x30] sm:$0xff]
    %v1813 = vld [vmem:[#allocation7 + $0x38] sm:$0xff]
    %v1814 = vld [vmem:[#allocation7 + $0x40] sm:$0xff]
    %v1815 = vld [vmem:[#allocation7 + $0x48] sm:$0xff]
    %v1816 = vld [vmem:[#allocation7 + $0x50] sm:$0xff]
    %v1817 = vld [vmem:[#allocation7 + $0x58] sm:$0xff]
    %v1818 = vld [vmem:[#allocation7 + $0x60] sm:$0xff]
    %v1819 = vld [vmem:[#allocation7 + $0x68] sm:$0xff]
    %v1820 = vld [vmem:[#allocation7 + $0x70] sm:$0xff]
    %v1821 = vld [vmem:[#allocation7 + $0x78] sm:$0xff]
    %v1822 = vld [vmem:[#allocation7 + $0x80] sm:$0xff]
    %v1823 = vld [vmem:[#allocation7 + $0x88] sm:$0xff]
    %v1824 = vld [vmem:[#allocation7 + $0x90] sm:$0xff]
    %v1825 = vld [vmem:[#allocation7 + $0x98] sm:$0xff]
    %v1826 = vld [vmem:[#allocation7 + $0xa0] sm:$0xff]
    %v1827 = vld [vmem:[#allocation7 + $0xa8] sm:$0xff]
    %v1828 = vld [vmem:[#allocation7 + $0xb0] sm:$0xff]
    %v1829 = vld [vmem:[#allocation7 + $0xb8] sm:$0xff]
    %v1830 = vld [vmem:[#allocation7 + $0xc0] sm:$0xff]
    %v1831 = vld [vmem:[#allocation7 + $0xc8] sm:$0xff]
    %v1832 = vld [vmem:[#allocation7 + $0xd0] sm:$0xff]
    %v1833 = vld [vmem:[#allocation7 + $0xd8] sm:$0xff]
    %v1834 = vld [vmem:[#allocation7 + $0xe0] sm:$0xff]
    %v1835 = vld [vmem:[#allocation7 + $0xe8] sm:$0xff]
    %v1836 = vld [vmem:[#allocation7 + $0xf0] sm:$0xff]
    %v1837 = vld [vmem:[#allocation7 + $0xf8] sm:$0xff]
    %v1838 = vld [vmem:[%s6] sm:$0x3]
    %v1840 = vperm.slane %v1838, 0
    %v1841 = vperm.slane %v1838, 1
    %v1876 = vunpack.c.l.b16 %v1806
    %v1877 = vunpack.c.h.b16 %v1806
    %v1878 = vunpack.c.l.b16 %v1807
    %v1879 = vunpack.c.h.b16 %v1807
    %v1880 = vunpack.c.l.b16 %v1808
    %v1881 = vunpack.c.h.b16 %v1808
    %v1882 = vunpack.c.l.b16 %v1809
    %v1883 = vunpack.c.h.b16 %v1809
    %v1884 = vunpack.c.l.b16 %v1810
    %v1885 = vunpack.c.h.b16 %v1810
    %v1886 = vunpack.c.l.b16 %v1811
    %v1887 = vunpack.c.h.b16 %v1811
    %v1888 = vunpack.c.l.b16 %v1812
    %v1889 = vunpack.c.h.b16 %v1812
    %v1890 = vunpack.c.l.b16 %v1813
    %v1891 = vunpack.c.h.b16 %v1813
    %v1892 = vunpack.c.l.b16 %v1814
    %v1893 = vunpack.c.h.b16 %v1814
    %v1894 = vunpack.c.l.b16 %v1815
    %v1895 = vunpack.c.h.b16 %v1815
    %v1896 = vunpack.c.l.b16 %v1816
    %v1897 = vunpack.c.h.b16 %v1816
    %v1898 = vunpack.c.l.b16 %v1817
    %v1899 = vunpack.c.h.b16 %v1817
    %v1900 = vunpack.c.l.b16 %v1818
    %v1901 = vunpack.c.h.b16 %v1818
    %v1902 = vunpack.c.l.b16 %v1819
    %v1903 = vunpack.c.h.b16 %v1819
    %v1904 = vunpack.c.l.b16 %v1820
    %v1905 = vunpack.c.h.b16 %v1820
    %v1906 = vunpack.c.l.b16 %v1821
    %v1907 = vunpack.c.h.b16 %v1821
    %v1908 = vunpack.c.l.b16 %v1822
    %v1909 = vunpack.c.h.b16 %v1822
    %v1910 = vunpack.c.l.b16 %v1823
    %v1911 = vunpack.c.h.b16 %v1823
    %v1912 = vunpack.c.l.b16 %v1824
    %v1913 = vunpack.c.h.b16 %v1824
    %v1914 = vunpack.c.l.b16 %v1825
    %v1915 = vunpack.c.h.b16 %v1825
    %v1916 = vunpack.c.l.b16 %v1826
    %v1917 = vunpack.c.h.b16 %v1826
    %v1918 = vunpack.c.l.b16 %v1827
    %v1919 = vunpack.c.h.b16 %v1827
    %v1920 = vunpack.c.l.b16 %v1828
    %v1921 = vunpack.c.h.b16 %v1828
    %v1922 = vunpack.c.l.b16 %v1829
    %v1923 = vunpack.c.h.b16 %v1829
    %v1924 = vunpack.c.l.b16 %v1830
    %v1925 = vunpack.c.h.b16 %v1830
    %v1926 = vunpack.c.l.b16 %v1831
    %v1927 = vunpack.c.h.b16 %v1831
    %v1928 = vunpack.c.l.b16 %v1832
    %v1929 = vunpack.c.h.b16 %v1832
    %v1930 = vunpack.c.l.b16 %v1833
    %v1931 = vunpack.c.h.b16 %v1833
    %v1932 = vunpack.c.l.b16 %v1834
    %v1933 = vunpack.c.h.b16 %v1834
    %v1934 = vunpack.c.l.b16 %v1835
    %v1935 = vunpack.c.h.b16 %v1835
    %v1936 = vunpack.c.l.b16 %v1836
    %v1937 = vunpack.c.h.b16 %v1836
    %v1938 = vunpack.c.l.b16 %v1837
    %v1939 = vunpack.c.h.b16 %v1837
    %v1940 = vpack.c.b16 %v1878, %v1876
    %v1941 = vpack.c.b16 %v1879, %v1877
    %v1942 = vpack.c.b16 %v1882, %v1880
    %v1943 = vpack.c.b16 %v1883, %v1881
    %v1944 = vpack.c.b16 %v1886, %v1884
    %v1945 = vpack.c.b16 %v1887, %v1885
    %v1946 = vpack.c.b16 %v1890, %v1888
    %v1947 = vpack.c.b16 %v1891, %v1889
    %v1948 = vpack.c.b16 %v1894, %v1892
    %v1949 = vpack.c.b16 %v1895, %v1893
    %v1950 = vpack.c.b16 %v1898, %v1896
    %v1951 = vpack.c.b16 %v1899, %v1897
    %v1952 = vpack.c.b16 %v1902, %v1900
    %v1953 = vpack.c.b16 %v1903, %v1901
    %v1954 = vpack.c.b16 %v1906, %v1904
    %v1955 = vpack.c.b16 %v1907, %v1905
    %v1956 = vpack.c.b16 %v1910, %v1908
    %v1957 = vpack.c.b16 %v1911, %v1909
    %v1958 = vpack.c.b16 %v1914, %v1912
    %v1959 = vpack.c.b16 %v1915, %v1913
    %v1960 = vpack.c.b16 %v1918, %v1916
    %v1961 = vpack.c.b16 %v1919, %v1917
    %v1962 = vpack.c.b16 %v1922, %v1920
    %v1963 = vpack.c.b16 %v1923, %v1921
    %v1964 = vpack.c.b16 %v1926, %v1924
    %v1965 = vpack.c.b16 %v1927, %v1925
    %v1966 = vpack.c.b16 %v1930, %v1928
    %v1967 = vpack.c.b16 %v1931, %v1929
    %v1968 = vpack.c.b16 %v1934, %v1932
    %v1969 = vpack.c.b16 %v1935, %v1933
    %v1970 = vpack.c.b16 %v1938, %v1936
    %v1971 = vpack.c.b16 %v1939, %v1937
    %2004 = vmatpush.bf16.msra.mxu0 %v1954
    %2005 = vmatpush.bf16.msra.mxu0 %v1952
    %2006 = vmatpush.bf16.msra.mxu0 %v1950
    %2007 = vmatpush.bf16.msra.mxu0 %v1948
    %2008 = vmatpush.bf16.msra.mxu0 %v1946
    %2009 = vmatpush.bf16.msra.mxu0 %v1944
    %2010 = vmatpush.bf16.msra.mxu0 %v1942
    %2011 = vmatpush.bf16.msra.mxu0 %v1940
    %2012 = vmatmul.bf16.gmra.mxu0 %v1774
    %v2013 = vpop.f32.mrf.mxu0
    %v2014 = vadd.f32 %v1840, %v2013
    %v2015 = vpop.f32.mrf.mxu0
    %v2016 = vadd.f32 %v1840, %v2015
    %2017 = vmatmul.bf16.gmra.mxu0 %v1776
    %v2018 = vpop.f32.mrf.mxu0
    %v2019 = vadd.f32 %v1840, %v2018
    %v2020 = vpop.f32.mrf.mxu0
    %v2021 = vadd.f32 %v1840, %v2020
    %2022 = vmatmul.bf16.gmra.mxu0 %v1778
    %v2023 = vpop.f32.mrf.mxu0
    %v2024 = vadd.f32 %v1840, %v2023
    %v2025 = vpop.f32.mrf.mxu0
    %v2026 = vadd.f32 %v1840, %v2025
    %2027 = vmatmul.bf16.gmra.mxu0 %v1780
    %v2028 = vpop.f32.mrf.mxu0
    %v2029 = vadd.f32 %v1840, %v2028
    %v2030 = vpop.f32.mrf.mxu0
    %v2031 = vadd.f32 %v1840, %v2030
    %2032 = vmatmul.bf16.gmra.mxu0 %v1782
    %v2033 = vpop.f32.mrf.mxu0
    %v2034 = vadd.f32 %v1840, %v2033
    %v2035 = vpop.f32.mrf.mxu0
    %v2036 = vadd.f32 %v1840, %v2035
    %2037 = vmatmul.bf16.gmra.mxu0 %v1784
    %v2038 = vpop.f32.mrf.mxu0
    %v2039 = vadd.f32 %v1840, %v2038
    %v2040 = vpop.f32.mrf.mxu0
    %v2041 = vadd.f32 %v1840, %v2040
    %2042 = vmatmul.bf16.gmra.mxu0 %v1786
    %v2043 = vpop.f32.mrf.mxu0
    %v2044 = vadd.f32 %v1840, %v2043
    %v2045 = vpop.f32.mrf.mxu0
    %v2046 = vadd.f32 %v1840, %v2045
    %2047 = vmatmul.bf16.gmra.mxu0 %v1788
    %v2048 = vpop.f32.mrf.mxu0
    %v2049 = vadd.f32 %v1840, %v2048
    %v2050 = vpop.f32.mrf.mxu0
    %v2051 = vadd.f32 %v1840, %v2050
    %2052 = vmatmul.bf16.gmra.mxu0 %v1790
    %v2053 = vpop.f32.mrf.mxu0
    %v2054 = vadd.f32 %v1840, %v2053
    %v2055 = vpop.f32.mrf.mxu0
    %v2056 = vadd.f32 %v1840, %v2055
    %2057 = vmatmul.bf16.gmra.mxu0 %v1792
    %v2058 = vpop.f32.mrf.mxu0
    %v2059 = vadd.f32 %v1840, %v2058
    %v2060 = vpop.f32.mrf.mxu0
    %v2061 = vadd.f32 %v1840, %v2060
    %2062 = vmatmul.bf16.gmra.mxu0 %v1794
    %v2063 = vpop.f32.mrf.mxu0
    %v2064 = vadd.f32 %v1840, %v2063
    %v2065 = vpop.f32.mrf.mxu0
    %v2066 = vadd.f32 %v1840, %v2065
    %2067 = vmatmul.bf16.gmra.mxu0 %v1796
    %v2068 = vpop.f32.mrf.mxu0
    %v2069 = vadd.f32 %v1840, %v2068
    %v2070 = vpop.f32.mrf.mxu0
    %v2071 = vadd.f32 %v1840, %v2070
    %2072 = vmatmul.bf16.gmra.mxu0 %v1798
    %v2073 = vpop.f32.mrf.mxu0
    %v2074 = vadd.f32 %v1840, %v2073
    %v2075 = vpop.f32.mrf.mxu0
    %v2076 = vadd.f32 %v1840, %v2075
    %2077 = vmatmul.bf16.gmra.mxu0 %v1800
    %v2078 = vpop.f32.mrf.mxu0
    %v2079 = vadd.f32 %v1840, %v2078
    %v2080 = vpop.f32.mrf.mxu0
    %v2081 = vadd.f32 %v1840, %v2080
    %2082 = vmatmul.bf16.gmra.mxu0 %v1802
    %v2083 = vpop.f32.mrf.mxu0
    %v2084 = vadd.f32 %v1840, %v2083
    %v2085 = vpop.f32.mrf.mxu0
    %v2086 = vadd.f32 %v1840, %v2085
    %2087 = vmatmul.bf16.gmra.mxu0 %v1804
    %v2088 = vpop.f32.mrf.mxu0
    %v2089 = vadd.f32 %v1840, %v2088
    %v2090 = vpop.f32.mrf.mxu0
    %v2091 = vadd.f32 %v1840, %v2090
    %2092 = vdwg.mxu0
    %2093 = vmatpush.bf16.msra.mxu0 %v1970
    %2094 = vmatpush.bf16.msra.mxu0 %v1968
    %2095 = vmatpush.bf16.msra.mxu0 %v1966
    %2096 = vmatpush.bf16.msra.mxu0 %v1964
    %2097 = vmatpush.bf16.msra.mxu0 %v1962
    %2098 = vmatpush.bf16.msra.mxu0 %v1960
    %2099 = vmatpush.bf16.msra.mxu0 %v1958
    %2100 = vmatpush.bf16.msra.mxu0 %v1956
    %2101 = vmatmul.bf16.gmra.mxu0 %v1775
    %v2102 = vpop.f32.mrf.mxu0
    %v2103 = vadd.f32 %v2014, %v2102
    %v2104 = vpop.f32.mrf.mxu0
    %v2105 = vadd.f32 %v2016, %v2104
    %2106 = vmatmul.bf16.gmra.mxu0 %v1777
    %v2107 = vpop.f32.mrf.mxu0
    %v2108 = vadd.f32 %v2019, %v2107
    %v2109 = vpop.f32.mrf.mxu0
    %v2110 = vadd.f32 %v2021, %v2109
    %2111 = vmatmul.bf16.gmra.mxu0 %v1779
    %v2112 = vpop.f32.mrf.mxu0
    %v2113 = vadd.f32 %v2024, %v2112
    %v2114 = vpop.f32.mrf.mxu0
    %v2115 = vadd.f32 %v2026, %v2114
    %2116 = vmatmul.bf16.gmra.mxu0 %v1781
    %v2117 = vpop.f32.mrf.mxu0
    %v2118 = vadd.f32 %v2029, %v2117
    %v2119 = vpop.f32.mrf.mxu0
    %v2120 = vadd.f32 %v2031, %v2119
    %2121 = vmatmul.bf16.gmra.mxu0 %v1783
    %v2122 = vpop.f32.mrf.mxu0
    %v2123 = vadd.f32 %v2034, %v2122
    %v2124 = vpop.f32.mrf.mxu0
    %v2125 = vadd.f32 %v2036, %v2124
    %2126 = vmatmul.bf16.gmra.mxu0 %v1785
    %v2127 = vpop.f32.mrf.mxu0
    %v2128 = vadd.f32 %v2039, %v2127
    %v2129 = vpop.f32.mrf.mxu0
    %v2130 = vadd.f32 %v2041, %v2129
    %2131 = vmatmul.bf16.gmra.mxu0 %v1787
    %v2132 = vpop.f32.mrf.mxu0
    %v2133 = vadd.f32 %v2044, %v2132
    %v2134 = vpop.f32.mrf.mxu0
    %v2135 = vadd.f32 %v2046, %v2134
    %2136 = vmatmul.bf16.gmra.mxu0 %v1789
    %v2137 = vpop.f32.mrf.mxu0
    %v2138 = vadd.f32 %v2049, %v2137
    %v2139 = vpop.f32.mrf.mxu0
    %v2140 = vadd.f32 %v2051, %v2139
    %2141 = vmatmul.bf16.gmra.mxu0 %v1791
    %v2142 = vpop.f32.mrf.mxu0
    %v2143 = vadd.f32 %v2054, %v2142
    %v2144 = vpop.f32.mrf.mxu0
    %v2145 = vadd.f32 %v2056, %v2144
    %2146 = vmatmul.bf16.gmra.mxu0 %v1793
    %v2147 = vpop.f32.mrf.mxu0
    %v2148 = vadd.f32 %v2059, %v2147
    %v2149 = vpop.f32.mrf.mxu0
    %v2150 = vadd.f32 %v2061, %v2149
    %2151 = vmatmul.bf16.gmra.mxu0 %v1795
    %v2152 = vpop.f32.mrf.mxu0
    %v2153 = vadd.f32 %v2064, %v2152
    %v2154 = vpop.f32.mrf.mxu0
    %v2155 = vadd.f32 %v2066, %v2154
    %2156 = vmatmul.bf16.gmra.mxu0 %v1797
    %v2157 = vpop.f32.mrf.mxu0
    %v2158 = vadd.f32 %v2069, %v2157
    %v2159 = vpop.f32.mrf.mxu0
    %v2160 = vadd.f32 %v2071, %v2159
    %2161 = vmatmul.bf16.gmra.mxu0 %v1799
    %v2162 = vpop.f32.mrf.mxu0
    %v2163 = vadd.f32 %v2074, %v2162
    %v2164 = vpop.f32.mrf.mxu0
    %v2165 = vadd.f32 %v2076, %v2164
    %2166 = vmatmul.bf16.gmra.mxu0 %v1801
    %v2167 = vpop.f32.mrf.mxu0
    %v2168 = vadd.f32 %v2079, %v2167
    %v2169 = vpop.f32.mrf.mxu0
    %v2170 = vadd.f32 %v2081, %v2169
    %2171 = vmatmul.bf16.gmra.mxu0 %v1803
    %v2172 = vpop.f32.mrf.mxu0
    %v2173 = vadd.f32 %v2084, %v2172
    %v2174 = vpop.f32.mrf.mxu0
    %v2175 = vadd.f32 %v2086, %v2174
    %2176 = vmatmul.bf16.gmra.mxu0 %v1805
    %v2177 = vpop.f32.mrf.mxu0
    %v2178 = vadd.f32 %v2089, %v2177
    %v2179 = vpop.f32.mrf.mxu0
    %v2180 = vadd.f32 %v2091, %v2179
    %2181 = vdwg.mxu0
    %2182 = vmatpush.bf16.msra.mxu0 %v1955
    %2183 = vmatpush.bf16.msra.mxu0 %v1953
    %2184 = vmatpush.bf16.msra.mxu0 %v1951
    %2185 = vmatpush.bf16.msra.mxu0 %v1949
    %2186 = vmatpush.bf16.msra.mxu0 %v1947
    %2187 = vmatpush.bf16.msra.mxu0 %v1945
    %2188 = vmatpush.bf16.msra.mxu0 %v1943
    %2189 = vmatpush.bf16.msra.mxu0 %v1941
    %2190 = vmatmul.bf16.gmra.mxu0 %v1774
    %v2191 = vpop.f32.mrf.mxu0
    %v2192 = vadd.f32 %v1841, %v2191
    %v2193 = vpop.f32.mrf.mxu0
    %v2194 = vadd.f32 %v1841, %v2193
    %2195 = vmatmul.bf16.gmra.mxu0 %v1776
    %v2196 = vpop.f32.mrf.mxu0
    %v2197 = vadd.f32 %v1841, %v2196
    %v2198 = vpop.f32.mrf.mxu0
    %v2199 = vadd.f32 %v1841, %v2198
    %2200 = vmatmul.bf16.gmra.mxu0 %v1778
    %v2201 = vpop.f32.mrf.mxu0
    %v2202 = vadd.f32 %v1841, %v2201
    %v2203 = vpop.f32.mrf.mxu0
    %v2204 = vadd.f32 %v1841, %v2203
    %2205 = vmatmul.bf16.gmra.mxu0 %v1780
    %v2206 = vpop.f32.mrf.mxu0
    %v2207 = vadd.f32 %v1841, %v2206
    %v2208 = vpop.f32.mrf.mxu0
    %v2209 = vadd.f32 %v1841, %v2208
    %2210 = vmatmul.bf16.gmra.mxu0 %v1782
    %v2211 = vpop.f32.mrf.mxu0
    %v2212 = vadd.f32 %v1841, %v2211
    %v2213 = vpop.f32.mrf.mxu0
    %v2214 = vadd.f32 %v1841, %v2213
    %2215 = vmatmul.bf16.gmra.mxu0 %v1784
    %v2216 = vpop.f32.mrf.mxu0
    %v2217 = vadd.f32 %v1841, %v2216
    %v2218 = vpop.f32.mrf.mxu0
    %v2219 = vadd.f32 %v1841, %v2218
    %2220 = vmatmul.bf16.gmra.mxu0 %v1786
    %v2221 = vpop.f32.mrf.mxu0
    %v2222 = vadd.f32 %v1841, %v2221
    %v2223 = vpop.f32.mrf.mxu0
    %v2224 = vadd.f32 %v1841, %v2223
    %2225 = vmatmul.bf16.gmra.mxu0 %v1788
    %v2226 = vpop.f32.mrf.mxu0
    %v2227 = vadd.f32 %v1841, %v2226
    %v2228 = vpop.f32.mrf.mxu0
    %v2229 = vadd.f32 %v1841, %v2228
    %2230 = vmatmul.bf16.gmra.mxu0 %v1790
    %v2231 = vpop.f32.mrf.mxu0
    %v2232 = vadd.f32 %v1841, %v2231
    %v2233 = vpop.f32.mrf.mxu0
    %v2234 = vadd.f32 %v1841, %v2233
    %2235 = vmatmul.bf16.gmra.mxu0 %v1792
    %v2236 = vpop.f32.mrf.mxu0
    %v2237 = vadd.f32 %v1841, %v2236
    %v2238 = vpop.f32.mrf.mxu0
    %v2239 = vadd.f32 %v1841, %v2238
    %2240 = vmatmul.bf16.gmra.mxu0 %v1794
    %v2241 = vpop.f32.mrf.mxu0
    %v2242 = vadd.f32 %v1841, %v2241
    %v2243 = vpop.f32.mrf.mxu0
    %v2244 = vadd.f32 %v1841, %v2243
    %2245 = vmatmul.bf16.gmra.mxu0 %v1796
    %v2246 = vpop.f32.mrf.mxu0
    %v2247 = vadd.f32 %v1841, %v2246
    %v2248 = vpop.f32.mrf.mxu0
    %v2249 = vadd.f32 %v1841, %v2248
    %2250 = vmatmul.bf16.gmra.mxu0 %v1798
    %v2251 = vpop.f32.mrf.mxu0
    %v2252 = vadd.f32 %v1841, %v2251
    %v2253 = vpop.f32.mrf.mxu0
    %v2254 = vadd.f32 %v1841, %v2253
    %2255 = vmatmul.bf16.gmra.mxu0 %v1800
    %v2256 = vpop.f32.mrf.mxu0
    %v2257 = vadd.f32 %v1841, %v2256
    %v2258 = vpop.f32.mrf.mxu0
    %v2259 = vadd.f32 %v1841, %v2258
    %2260 = vmatmul.bf16.gmra.mxu0 %v1802
    %v2261 = vpop.f32.mrf.mxu0
    %v2262 = vadd.f32 %v1841, %v2261
    %v2263 = vpop.f32.mrf.mxu0
    %v2264 = vadd.f32 %v1841, %v2263
    %2265 = vmatmul.bf16.gmra.mxu0 %v1804
    %v2266 = vpop.f32.mrf.mxu0
    %v2267 = vadd.f32 %v1841, %v2266
    %v2268 = vpop.f32.mrf.mxu0
    %v2269 = vadd.f32 %v1841, %v2268
    %2270 = vdwg.mxu0
    %2271 = vmatpush.bf16.msra.mxu0 %v1971
    %2272 = vmatpush.bf16.msra.mxu0 %v1969
    %2273 = vmatpush.bf16.msra.mxu0 %v1967
    %2274 = vmatpush.bf16.msra.mxu0 %v1965
    %2275 = vmatpush.bf16.msra.mxu0 %v1963
    %2276 = vmatpush.bf16.msra.mxu0 %v1961
    %2277 = vmatpush.bf16.msra.mxu0 %v1959
    %2278 = vmatpush.bf16.msra.mxu0 %v1957
    %2279 = vmatmul.bf16.gmra.mxu0 %v1775
    %v2280 = vpop.f32.mrf.mxu0
    %v2281 = vadd.f32 %v2192, %v2280
    %v2282 = vpop.f32.mrf.mxu0
    %v2283 = vadd.f32 %v2194, %v2282
    %2284 = vmatmul.bf16.gmra.mxu0 %v1777
    %v2285 = vpop.f32.mrf.mxu0
    %v2286 = vadd.f32 %v2197, %v2285
    %v2287 = vpop.f32.mrf.mxu0
    %v2288 = vadd.f32 %v2199, %v2287
    %2289 = vmatmul.bf16.gmra.mxu0 %v1779
    %v2290 = vpop.f32.mrf.mxu0
    %v2291 = vadd.f32 %v2202, %v2290
    %v2292 = vpop.f32.mrf.mxu0
    %v2293 = vadd.f32 %v2204, %v2292
    %2294 = vmatmul.bf16.gmra.mxu0 %v1781
    %v2295 = vpop.f32.mrf.mxu0
    %v2296 = vadd.f32 %v2207, %v2295
    %v2297 = vpop.f32.mrf.mxu0
    %v2298 = vadd.f32 %v2209, %v2297
    %2299 = vmatmul.bf16.gmra.mxu0 %v1783
    %v2300 = vpop.f32.mrf.mxu0
    %v2301 = vadd.f32 %v2212, %v2300
    %v2302 = vpop.f32.mrf.mxu0
    %v2303 = vadd.f32 %v2214, %v2302
    %2304 = vmatmul.bf16.gmra.mxu0 %v1785
    %v2305 = vpop.f32.mrf.mxu0
    %v2306 = vadd.f32 %v2217, %v2305
    %v2307 = vpop.f32.mrf.mxu0
    %v2308 = vadd.f32 %v2219, %v2307
    %2309 = vmatmul.bf16.gmra.mxu0 %v1787
    %v2310 = vpop.f32.mrf.mxu0
    %v2311 = vadd.f32 %v2222, %v2310
    %v2312 = vpop.f32.mrf.mxu0
    %v2313 = vadd.f32 %v2224, %v2312
    %2314 = vmatmul.bf16.gmra.mxu0 %v1789
    %v2315 = vpop.f32.mrf.mxu0
    %v2316 = vadd.f32 %v2227, %v2315
    %v2317 = vpop.f32.mrf.mxu0
    %v2318 = vadd.f32 %v2229, %v2317
    %2319 = vmatmul.bf16.gmra.mxu0 %v1791
    %v2320 = vpop.f32.mrf.mxu0
    %v2321 = vadd.f32 %v2232, %v2320
    %v2322 = vpop.f32.mrf.mxu0
    %v2323 = vadd.f32 %v2234, %v2322
    %2324 = vmatmul.bf16.gmra.mxu0 %v1793
    %v2325 = vpop.f32.mrf.mxu0
    %v2326 = vadd.f32 %v2237, %v2325
    %v2327 = vpop.f32.mrf.mxu0
    %v2328 = vadd.f32 %v2239, %v2327
    %2329 = vmatmul.bf16.gmra.mxu0 %v1795
    %v2330 = vpop.f32.mrf.mxu0
    %v2331 = vadd.f32 %v2242, %v2330
    %v2332 = vpop.f32.mrf.mxu0
    %v2333 = vadd.f32 %v2244, %v2332
    %2334 = vmatmul.bf16.gmra.mxu0 %v1797
    %v2335 = vpop.f32.mrf.mxu0
    %v2336 = vadd.f32 %v2247, %v2335
    %v2337 = vpop.f32.mrf.mxu0
    %v2338 = vadd.f32 %v2249, %v2337
    %2339 = vmatmul.bf16.gmra.mxu0 %v1799
    %v2340 = vpop.f32.mrf.mxu0
    %v2341 = vadd.f32 %v2252, %v2340
    %v2342 = vpop.f32.mrf.mxu0
    %v2343 = vadd.f32 %v2254, %v2342
    %2344 = vmatmul.bf16.gmra.mxu0 %v1801
    %v2345 = vpop.f32.mrf.mxu0
    %v2346 = vadd.f32 %v2257, %v2345
    %v2347 = vpop.f32.mrf.mxu0
    %v2348 = vadd.f32 %v2259, %v2347
    %2349 = vmatmul.bf16.gmra.mxu0 %v1803
    %v2350 = vpop.f32.mrf.mxu0
    %v2351 = vadd.f32 %v2262, %v2350
    %v2352 = vpop.f32.mrf.mxu0
    %v2353 = vadd.f32 %v2264, %v2352
    %2354 = vmatmul.bf16.gmra.mxu0 %v1805
    %v2355 = vpop.f32.mrf.mxu0
    %v2356 = vadd.f32 %v2267, %v2355
    %v2357 = vpop.f32.mrf.mxu0
    %v2358 = vadd.f32 %v2269, %v2357
    %2359 = vdwg.mxu0
    %v2360 = vmax.f32 %v2103, 0.0
    %v2361 = vmax.f32 %v2281, 0.0
    %v2362 = vmax.f32 %v2105, 0.0
    %v2363 = vmax.f32 %v2283, 0.0
    %v2364 = vmax.f32 %v2108, 0.0
    %v2365 = vmax.f32 %v2286, 0.0
    %v2366 = vmax.f32 %v2110, 0.0
    %v2367 = vmax.f32 %v2288, 0.0
    %v2368 = vmax.f32 %v2113, 0.0
    %v2369 = vmax.f32 %v2291, 0.0
    %v2370 = vmax.f32 %v2115, 0.0
    %v2371 = vmax.f32 %v2293, 0.0
    %v2372 = vmax.f32 %v2118, 0.0
    %v2373 = vmax.f32 %v2296, 0.0
    %v2374 = vmax.f32 %v2120, 0.0
    %v2375 = vmax.f32 %v2298, 0.0
    %v2376 = vmax.f32 %v2123, 0.0
    %v2377 = vmax.f32 %v2301, 0.0
    %v2378 = vmax.f32 %v2125, 0.0
    %v2379 = vmax.f32 %v2303, 0.0
    %v2380 = vmax.f32 %v2128, 0.0
    %v2381 = vmax.f32 %v2306, 0.0
    %v2382 = vmax.f32 %v2130, 0.0
    %v2383 = vmax.f32 %v2308, 0.0
    %v2384 = vmax.f32 %v2133, 0.0
    %v2385 = vmax.f32 %v2311, 0.0
    %v2386 = vmax.f32 %v2135, 0.0
    %v2387 = vmax.f32 %v2313, 0.0
    %v2388 = vmax.f32 %v2138, 0.0
    %v2389 = vmax.f32 %v2316, 0.0
    %v2390 = vmax.f32 %v2140, 0.0
    %v2391 = vmax.f32 %v2318, 0.0
    %v2392 = vmax.f32 %v2143, 0.0
    %v2393 = vmax.f32 %v2321, 0.0
    %v2394 = vmax.f32 %v2145, 0.0
    %v2395 = vmax.f32 %v2323, 0.0
    %v2396 = vmax.f32 %v2148, 0.0
    %v2397 = vmax.f32 %v2326, 0.0
    %v2398 = vmax.f32 %v2150, 0.0
    %v2399 = vmax.f32 %v2328, 0.0
    %v2400 = vmax.f32 %v2153, 0.0
    %v2401 = vmax.f32 %v2331, 0.0
    %v2402 = vmax.f32 %v2155, 0.0
    %v2403 = vmax.f32 %v2333, 0.0
    %v2404 = vmax.f32 %v2158, 0.0
    %v2405 = vmax.f32 %v2336, 0.0
    %v2406 = vmax.f32 %v2160, 0.0
    %v2407 = vmax.f32 %v2338, 0.0
    %v2408 = vmax.f32 %v2163, 0.0
    %v2409 = vmax.f32 %v2341, 0.0
    %v2410 = vmax.f32 %v2165, 0.0
    %v2411 = vmax.f32 %v2343, 0.0
    %v2412 = vmax.f32 %v2168, 0.0
    %v2413 = vmax.f32 %v2346, 0.0
    %v2414 = vmax.f32 %v2170, 0.0
    %v2415 = vmax.f32 %v2348, 0.0
    %v2416 = vmax.f32 %v2173, 0.0
    %v2417 = vmax.f32 %v2351, 0.0
    %v2418 = vmax.f32 %v2175, 0.0
    %v2419 = vmax.f32 %v2353, 0.0
    %v2420 = vmax.f32 %v2178, 0.0
    %v2421 = vmax.f32 %v2356, 0.0
    %v2422 = vmax.f32 %v2180, 0.0
    %v2423 = vmax.f32 %v2358, 0.0
    %v2424 = vpack.c.bf16 %v2362, %v2360
    %v2425 = vpack.c.bf16 %v2363, %v2361
    %v2426 = vpack.c.bf16 %v2366, %v2364
    %v2427 = vpack.c.bf16 %v2367, %v2365
    %v2428 = vpack.c.bf16 %v2370, %v2368
    %v2429 = vpack.c.bf16 %v2371, %v2369
    %v2430 = vpack.c.bf16 %v2374, %v2372
    %v2431 = vpack.c.bf16 %v2375, %v2373
    %v2432 = vpack.c.bf16 %v2378, %v2376
    %v2433 = vpack.c.bf16 %v2379, %v2377
    %v2434 = vpack.c.bf16 %v2382, %v2380
    %v2435 = vpack.c.bf16 %v2383, %v2381
    %v2436 = vpack.c.bf16 %v2386, %v2384
    %v2437 = vpack.c.bf16 %v2387, %v2385
    %v2438 = vpack.c.bf16 %v2390, %v2388
    %v2439 = vpack.c.bf16 %v2391, %v2389
    %v2440 = vpack.c.bf16 %v2394, %v2392
    %v2441 = vpack.c.bf16 %v2395, %v2393
    %v2442 = vpack.c.bf16 %v2398, %v2396
    %v2443 = vpack.c.bf16 %v2399, %v2397
    %v2444 = vpack.c.bf16 %v2402, %v2400
    %v2445 = vpack.c.bf16 %v2403, %v2401
    %v2446 = vpack.c.bf16 %v2406, %v2404
    %v2447 = vpack.c.bf16 %v2407, %v2405
    %v2448 = vpack.c.bf16 %v2410, %v2408
    %v2449 = vpack.c.bf16 %v2411, %v2409
    %v2450 = vpack.c.bf16 %v2414, %v2412
    %v2451 = vpack.c.bf16 %v2415, %v2413
    %v2452 = vpack.c.bf16 %v2418, %v2416
    %v2453 = vpack.c.bf16 %v2419, %v2417
    %v2454 = vpack.c.bf16 %v2422, %v2420
    %v2455 = vpack.c.bf16 %v2423, %v2421
    %v2456 = vld [vmem:[#allocation8] sm:$0xf]
    %v2457 = vld [vmem:[#allocation8 + $0x4] sm:$0xf]
    %v2458 = vld [vmem:[#allocation8 + $0x8] sm:$0xf]
    %v2459 = vld [vmem:[#allocation8 + $0xc] sm:$0xf]
    %v2460 = vld [vmem:[#allocation8 + $0x10] sm:$0xf]
    %v2461 = vld [vmem:[#allocation8 + $0x14] sm:$0xf]
    %v2462 = vld [vmem:[#allocation8 + $0x18] sm:$0xf]
    %v2463 = vld [vmem:[#allocation8 + $0x1c] sm:$0xf]
    %v2464 = vld [vmem:[#allocation8 + $0x20] sm:$0xf]
    %v2465 = vld [vmem:[#allocation8 + $0x24] sm:$0xf]
    %v2466 = vld [vmem:[#allocation8 + $0x28] sm:$0xf]
    %v2467 = vld [vmem:[#allocation8 + $0x2c] sm:$0xf]
    %v2468 = vld [vmem:[#allocation8 + $0x30] sm:$0xf]
    %v2469 = vld [vmem:[#allocation8 + $0x34] sm:$0xf]
    %v2470 = vld [vmem:[#allocation8 + $0x38] sm:$0xf]
    %v2471 = vld [vmem:[#allocation8 + $0x3c] sm:$0xf]
    %v2472 = vld [vmem:[#allocation8 + $0x40] sm:$0xf]
    %v2473 = vld [vmem:[#allocation8 + $0x44] sm:$0xf]
    %v2474 = vld [vmem:[#allocation8 + $0x48] sm:$0xf]
    %v2475 = vld [vmem:[#allocation8 + $0x4c] sm:$0xf]
    %v2476 = vld [vmem:[#allocation8 + $0x50] sm:$0xf]
    %v2477 = vld [vmem:[#allocation8 + $0x54] sm:$0xf]
    %v2478 = vld [vmem:[#allocation8 + $0x58] sm:$0xf]
    %v2479 = vld [vmem:[#allocation8 + $0x5c] sm:$0xf]
    %v2480 = vld [vmem:[#allocation8 + $0x60] sm:$0xf]
    %v2481 = vld [vmem:[#allocation8 + $0x64] sm:$0xf]
    %v2482 = vld [vmem:[#allocation8 + $0x68] sm:$0xf]
    %v2483 = vld [vmem:[#allocation8 + $0x6c] sm:$0xf]
    %v2484 = vld [vmem:[#allocation8 + $0x70] sm:$0xf]
    %v2485 = vld [vmem:[#allocation8 + $0x74] sm:$0xf]
    %v2486 = vld [vmem:[#allocation8 + $0x78] sm:$0xf]
    %v2487 = vld [vmem:[#allocation8 + $0x7c] sm:$0xf]
    %v2488 = vld [vmem:[%s8] sm:$0x1]
    %v2490 = vperm.slane %v2488, 0
    %v2524 = vunpack.c.l.b16 %v2456
    %v2525 = vunpack.c.l.b16 %v2457
    %v2526 = vunpack.c.l.b16 %v2458
    %v2527 = vunpack.c.l.b16 %v2459
    %v2528 = vunpack.c.l.b16 %v2460
    %v2529 = vunpack.c.l.b16 %v2461
    %v2530 = vunpack.c.l.b16 %v2462
    %v2531 = vunpack.c.l.b16 %v2463
    %v2532 = vunpack.c.l.b16 %v2464
    %v2533 = vunpack.c.l.b16 %v2465
    %v2534 = vunpack.c.l.b16 %v2466
    %v2535 = vunpack.c.l.b16 %v2467
    %v2536 = vunpack.c.l.b16 %v2468
    %v2537 = vunpack.c.l.b16 %v2469
    %v2538 = vunpack.c.l.b16 %v2470
    %v2539 = vunpack.c.l.b16 %v2471
    %v2540 = vunpack.c.l.b16 %v2472
    %v2541 = vunpack.c.l.b16 %v2473
    %v2542 = vunpack.c.l.b16 %v2474
    %v2543 = vunpack.c.l.b16 %v2475
    %v2544 = vunpack.c.l.b16 %v2476
    %v2545 = vunpack.c.l.b16 %v2477
    %v2546 = vunpack.c.l.b16 %v2478
    %v2547 = vunpack.c.l.b16 %v2479
    %v2548 = vunpack.c.l.b16 %v2480
    %v2549 = vunpack.c.l.b16 %v2481
    %v2550 = vunpack.c.l.b16 %v2482
    %v2551 = vunpack.c.l.b16 %v2483
    %v2552 = vunpack.c.l.b16 %v2484
    %v2553 = vunpack.c.l.b16 %v2485
    %v2554 = vunpack.c.l.b16 %v2486
    %v2555 = vunpack.c.l.b16 %v2487
    %v2556 = vpack.c.b16 %v2525, %v2524
    %v2557 = vpack.c.b16 %v2527, %v2526
    %v2558 = vpack.c.b16 %v2529, %v2528
    %v2559 = vpack.c.b16 %v2531, %v2530
    %v2560 = vpack.c.b16 %v2533, %v2532
    %v2561 = vpack.c.b16 %v2535, %v2534
    %v2562 = vpack.c.b16 %v2537, %v2536
    %v2563 = vpack.c.b16 %v2539, %v2538
    %v2564 = vpack.c.b16 %v2541, %v2540
    %v2565 = vpack.c.b16 %v2543, %v2542
    %v2566 = vpack.c.b16 %v2545, %v2544
    %v2567 = vpack.c.b16 %v2547, %v2546
    %v2568 = vpack.c.b16 %v2549, %v2548
    %v2569 = vpack.c.b16 %v2551, %v2550
    %v2570 = vpack.c.b16 %v2553, %v2552
    %v2571 = vpack.c.b16 %v2555, %v2554
    %2588 = vmatpush.bf16.msra.mxu0 %v2563
    %2589 = vmatpush.bf16.msra.mxu0 %v2562
    %2590 = vmatpush.bf16.msra.mxu0 %v2561
    %2591 = vmatpush.bf16.msra.mxu0 %v2560
    %2592 = vmatpush.bf16.msra.mxu0 %v2559
    %2593 = vmatpush.bf16.msra.mxu0 %v2558
    %2594 = vmatpush.bf16.msra.mxu0 %v2557
    %2595 = vmatpush.bf16.msra.mxu0 %v2556
    %2596 = vmatmul.bf16.gmra.mxu0 %v2424
    %v2597 = vpop.f32.mrf.mxu0
    %v2598 = vadd.f32 %v2490, %v2597
    %v2599 = vpop.f32.mrf.mxu0
    %v2600 = vadd.f32 %v2490, %v2599
    %2601 = vmatmul.bf16.gmra.mxu0 %v2426
    %v2602 = vpop.f32.mrf.mxu0
    %v2603 = vadd.f32 %v2490, %v2602
    %v2604 = vpop.f32.mrf.mxu0
    %v2605 = vadd.f32 %v2490, %v2604
    %2606 = vmatmul.bf16.gmra.mxu0 %v2428
    %v2607 = vpop.f32.mrf.mxu0
    %v2608 = vadd.f32 %v2490, %v2607
    %v2609 = vpop.f32.mrf.mxu0
    %v2610 = vadd.f32 %v2490, %v2609
    %2611 = vmatmul.bf16.gmra.mxu0 %v2430
    %v2612 = vpop.f32.mrf.mxu0
    %v2613 = vadd.f32 %v2490, %v2612
    %v2614 = vpop.f32.mrf.mxu0
    %v2615 = vadd.f32 %v2490, %v2614
    %2616 = vmatmul.bf16.gmra.mxu0 %v2432
    %v2617 = vpop.f32.mrf.mxu0
    %v2618 = vadd.f32 %v2490, %v2617
    %v2619 = vpop.f32.mrf.mxu0
    %v2620 = vadd.f32 %v2490, %v2619
    %2621 = vmatmul.bf16.gmra.mxu0 %v2434
    %v2622 = vpop.f32.mrf.mxu0
    %v2623 = vadd.f32 %v2490, %v2622
    %v2624 = vpop.f32.mrf.mxu0
    %v2625 = vadd.f32 %v2490, %v2624
    %2626 = vmatmul.bf16.gmra.mxu0 %v2436
    %v2627 = vpop.f32.mrf.mxu0
    %v2628 = vadd.f32 %v2490, %v2627
    %v2629 = vpop.f32.mrf.mxu0
    %v2630 = vadd.f32 %v2490, %v2629
    %2631 = vmatmul.bf16.gmra.mxu0 %v2438
    %v2632 = vpop.f32.mrf.mxu0
    %v2633 = vadd.f32 %v2490, %v2632
    %v2634 = vpop.f32.mrf.mxu0
    %v2635 = vadd.f32 %v2490, %v2634
    %2636 = vmatmul.bf16.gmra.mxu0 %v2440
    %v2637 = vpop.f32.mrf.mxu0
    %v2638 = vadd.f32 %v2490, %v2637
    %v2639 = vpop.f32.mrf.mxu0
    %v2640 = vadd.f32 %v2490, %v2639
    %2641 = vmatmul.bf16.gmra.mxu0 %v2442
    %v2642 = vpop.f32.mrf.mxu0
    %v2643 = vadd.f32 %v2490, %v2642
    %v2644 = vpop.f32.mrf.mxu0
    %v2645 = vadd.f32 %v2490, %v2644
    %2646 = vmatmul.bf16.gmra.mxu0 %v2444
    %v2647 = vpop.f32.mrf.mxu0
    %v2648 = vadd.f32 %v2490, %v2647
    %v2649 = vpop.f32.mrf.mxu0
    %v2650 = vadd.f32 %v2490, %v2649
    %2651 = vmatmul.bf16.gmra.mxu0 %v2446
    %v2652 = vpop.f32.mrf.mxu0
    %v2653 = vadd.f32 %v2490, %v2652
    %v2654 = vpop.f32.mrf.mxu0
    %v2655 = vadd.f32 %v2490, %v2654
    %2656 = vmatmul.bf16.gmra.mxu0 %v2448
    %v2657 = vpop.f32.mrf.mxu0
    %v2658 = vadd.f32 %v2490, %v2657
    %v2659 = vpop.f32.mrf.mxu0
    %v2660 = vadd.f32 %v2490, %v2659
    %2661 = vmatmul.bf16.gmra.mxu0 %v2450
    %v2662 = vpop.f32.mrf.mxu0
    %v2663 = vadd.f32 %v2490, %v2662
    %v2664 = vpop.f32.mrf.mxu0
    %v2665 = vadd.f32 %v2490, %v2664
    %2666 = vmatmul.bf16.gmra.mxu0 %v2452
    %v2667 = vpop.f32.mrf.mxu0
    %v2668 = vadd.f32 %v2490, %v2667
    %v2669 = vpop.f32.mrf.mxu0
    %v2670 = vadd.f32 %v2490, %v2669
    %2671 = vmatmul.bf16.gmra.mxu0 %v2454
    %v2672 = vpop.f32.mrf.mxu0
    %v2673 = vadd.f32 %v2490, %v2672
    %v2674 = vpop.f32.mrf.mxu0
    %v2675 = vadd.f32 %v2490, %v2674
    %2676 = vdwg.mxu0
    %2677 = vmatpush.bf16.msra.mxu0 %v2571
    %2678 = vmatpush.bf16.msra.mxu0 %v2570
    %2679 = vmatpush.bf16.msra.mxu0 %v2569
    %2680 = vmatpush.bf16.msra.mxu0 %v2568
    %2681 = vmatpush.bf16.msra.mxu0 %v2567
    %2682 = vmatpush.bf16.msra.mxu0 %v2566
    %2683 = vmatpush.bf16.msra.mxu0 %v2565
    %2684 = vmatpush.bf16.msra.mxu0 %v2564
    %2685 = vmatmul.bf16.gmra.mxu0 %v2425
    %v2686 = vpop.f32.mrf.mxu0
    %v2687 = vadd.f32 %v2598, %v2686
    %v2688 = vpop.f32.mrf.mxu0
    %v2689 = vadd.f32 %v2600, %v2688
    %2690 = vmatmul.bf16.gmra.mxu0 %v2427
    %v2691 = vpop.f32.mrf.mxu0
    %v2692 = vadd.f32 %v2603, %v2691
    %v2693 = vpop.f32.mrf.mxu0
    %v2694 = vadd.f32 %v2605, %v2693
    %2695 = vmatmul.bf16.gmra.mxu0 %v2429
    %v2696 = vpop.f32.mrf.mxu0
    %v2697 = vadd.f32 %v2608, %v2696
    %v2698 = vpop.f32.mrf.mxu0
    %v2699 = vadd.f32 %v2610, %v2698
    %2700 = vmatmul.bf16.gmra.mxu0 %v2431
    %v2701 = vpop.f32.mrf.mxu0
    %v2702 = vadd.f32 %v2613, %v2701
    %v2703 = vpop.f32.mrf.mxu0
    %v2704 = vadd.f32 %v2615, %v2703
    %2705 = vmatmul.bf16.gmra.mxu0 %v2433
    %v2706 = vpop.f32.mrf.mxu0
    %v2707 = vadd.f32 %v2618, %v2706
    %v2708 = vpop.f32.mrf.mxu0
    %v2709 = vadd.f32 %v2620, %v2708
    %2710 = vmatmul.bf16.gmra.mxu0 %v2435
    %v2711 = vpop.f32.mrf.mxu0
    %v2712 = vadd.f32 %v2623, %v2711
    %v2713 = vpop.f32.mrf.mxu0
    %v2714 = vadd.f32 %v2625, %v2713
    %2715 = vmatmul.bf16.gmra.mxu0 %v2437
    %v2716 = vpop.f32.mrf.mxu0
    %v2717 = vadd.f32 %v2628, %v2716
    %v2718 = vpop.f32.mrf.mxu0
    %v2719 = vadd.f32 %v2630, %v2718
    %2720 = vmatmul.bf16.gmra.mxu0 %v2439
    %v2721 = vpop.f32.mrf.mxu0
    %v2722 = vadd.f32 %v2633, %v2721
    %v2723 = vpop.f32.mrf.mxu0
    %v2724 = vadd.f32 %v2635, %v2723
    %2725 = vmatmul.bf16.gmra.mxu0 %v2441
    %v2726 = vpop.f32.mrf.mxu0
    %v2727 = vadd.f32 %v2638, %v2726
    %v2728 = vpop.f32.mrf.mxu0
    %v2729 = vadd.f32 %v2640, %v2728
    %2730 = vmatmul.bf16.gmra.mxu0 %v2443
    %v2731 = vpop.f32.mrf.mxu0
    %v2732 = vadd.f32 %v2643, %v2731
    %v2733 = vpop.f32.mrf.mxu0
    %v2734 = vadd.f32 %v2645, %v2733
    %2735 = vmatmul.bf16.gmra.mxu0 %v2445
    %v2736 = vpop.f32.mrf.mxu0
    %v2737 = vadd.f32 %v2648, %v2736
    %v2738 = vpop.f32.mrf.mxu0
    %v2739 = vadd.f32 %v2650, %v2738
    %2740 = vmatmul.bf16.gmra.mxu0 %v2447
    %v2741 = vpop.f32.mrf.mxu0
    %v2742 = vadd.f32 %v2653, %v2741
    %v2743 = vpop.f32.mrf.mxu0
    %v2744 = vadd.f32 %v2655, %v2743
    %2745 = vmatmul.bf16.gmra.mxu0 %v2449
    %v2746 = vpop.f32.mrf.mxu0
    %v2747 = vadd.f32 %v2658, %v2746
    %v2748 = vpop.f32.mrf.mxu0
    %v2749 = vadd.f32 %v2660, %v2748
    %2750 = vmatmul.bf16.gmra.mxu0 %v2451
    %v2751 = vpop.f32.mrf.mxu0
    %v2752 = vadd.f32 %v2663, %v2751
    %v2753 = vpop.f32.mrf.mxu0
    %v2754 = vadd.f32 %v2665, %v2753
    %2755 = vmatmul.bf16.gmra.mxu0 %v2453
    %v2756 = vpop.f32.mrf.mxu0
    %v2757 = vadd.f32 %v2668, %v2756
    %v2758 = vpop.f32.mrf.mxu0
    %v2759 = vadd.f32 %v2670, %v2758
    %2760 = vmatmul.bf16.gmra.mxu0 %v2455
    %v2761 = vpop.f32.mrf.mxu0
    %v2762 = vadd.f32 %v2673, %v2761
    %v2763 = vpop.f32.mrf.mxu0
    %v2764 = vadd.f32 %v2675, %v2763
    %2765 = vdwg.mxu0
    %v2766 = vlaneseq
    %v2767 = vand.u32 %v2766, 127
    %vm2768 = vcmp.lt.s32.totalorder %v2767, 10
    %v2769 = vsel %vm2768, %v2687, -1e+30
    %v2770 = vsel %vm2768, %v2689, -1e+30
    %v2771 = vsel %vm2768, %v2692, -1e+30
    %v2772 = vsel %vm2768, %v2694, -1e+30
    %v2773 = vsel %vm2768, %v2697, -1e+30
    %v2774 = vsel %vm2768, %v2699, -1e+30
    %v2775 = vsel %vm2768, %v2702, -1e+30
    %v2776 = vsel %vm2768, %v2704, -1e+30
    %v2777 = vsel %vm2768, %v2707, -1e+30
    %v2778 = vsel %vm2768, %v2709, -1e+30
    %v2779 = vsel %vm2768, %v2712, -1e+30
    %v2780 = vsel %vm2768, %v2714, -1e+30
    %v2781 = vsel %vm2768, %v2717, -1e+30
    %v2782 = vsel %vm2768, %v2719, -1e+30
    %v2783 = vsel %vm2768, %v2722, -1e+30
    %v2784 = vsel %vm2768, %v2724, -1e+30
    %v2785 = vsel %vm2768, %v2727, -1e+30
    %v2786 = vsel %vm2768, %v2729, -1e+30
    %v2787 = vsel %vm2768, %v2732, -1e+30
    %v2788 = vsel %vm2768, %v2734, -1e+30
    %v2789 = vsel %vm2768, %v2737, -1e+30
    %v2790 = vsel %vm2768, %v2739, -1e+30
    %v2791 = vsel %vm2768, %v2742, -1e+30
    %v2792 = vsel %vm2768, %v2744, -1e+30
    %v2793 = vsel %vm2768, %v2747, -1e+30
    %v2794 = vsel %vm2768, %v2749, -1e+30
    %v2795 = vsel %vm2768, %v2752, -1e+30
    %v2796 = vsel %vm2768, %v2754, -1e+30
    %v2797 = vsel %vm2768, %v2757, -1e+30
    %v2798 = vsel %vm2768, %v2759, -1e+30
    %v2799 = vsel %vm2768, %v2762, -1e+30
    %v2800 = vsel %vm2768, %v2764, -1e+30
    %2801 = vmax.xlane.f32.xlu0 %v2769
    %v2802 = vpop.xlane.xlu0 %2801
    %2803 = vmax.xlane.f32.xlu0 %v2770
    %v2804 = vpop.xlane.xlu0 %2803
    %2805 = vmax.xlane.f32.xlu0 %v2771
    %v2806 = vpop.xlane.xlu0 %2805
    %2807 = vmax.xlane.f32.xlu0 %v2772
    %v2808 = vpop.xlane.xlu0 %2807
    %2809 = vmax.xlane.f32.xlu0 %v2773
    %v2810 = vpop.xlane.xlu0 %2809
    %2811 = vmax.xlane.f32.xlu0 %v2774
    %v2812 = vpop.xlane.xlu0 %2811
    %2813 = vmax.xlane.f32.xlu0 %v2775
    %v2814 = vpop.xlane.xlu0 %2813
    %2815 = vmax.xlane.f32.xlu0 %v2776
    %v2816 = vpop.xlane.xlu0 %2815
    %2817 = vmax.xlane.f32.xlu0 %v2777
    %v2818 = vpop.xlane.xlu0 %2817
    %2819 = vmax.xlane.f32.xlu0 %v2778
    %v2820 = vpop.xlane.xlu0 %2819
    %2821 = vmax.xlane.f32.xlu0 %v2779
    %v2822 = vpop.xlane.xlu0 %2821
    %2823 = vmax.xlane.f32.xlu0 %v2780
    %v2824 = vpop.xlane.xlu0 %2823
    %2825 = vmax.xlane.f32.xlu0 %v2781
    %v2826 = vpop.xlane.xlu0 %2825
    %2827 = vmax.xlane.f32.xlu0 %v2782
    %v2828 = vpop.xlane.xlu0 %2827
    %2829 = vmax.xlane.f32.xlu0 %v2783
    %v2830 = vpop.xlane.xlu0 %2829
    %2831 = vmax.xlane.f32.xlu0 %v2784
    %v2832 = vpop.xlane.xlu0 %2831
    %2833 = vmax.xlane.f32.xlu0 %v2785
    %v2834 = vpop.xlane.xlu0 %2833
    %2835 = vmax.xlane.f32.xlu0 %v2786
    %v2836 = vpop.xlane.xlu0 %2835
    %2837 = vmax.xlane.f32.xlu0 %v2787
    %v2838 = vpop.xlane.xlu0 %2837
    %2839 = vmax.xlane.f32.xlu0 %v2788
    %v2840 = vpop.xlane.xlu0 %2839
    %2841 = vmax.xlane.f32.xlu0 %v2789
    %v2842 = vpop.xlane.xlu0 %2841
    %2843 = vmax.xlane.f32.xlu0 %v2790
    %v2844 = vpop.xlane.xlu0 %2843
    %2845 = vmax.xlane.f32.xlu0 %v2791
    %v2846 = vpop.xlane.xlu0 %2845
    %2847 = vmax.xlane.f32.xlu0 %v2792
    %v2848 = vpop.xlane.xlu0 %2847
    %2849 = vmax.xlane.f32.xlu0 %v2793
    %v2850 = vpop.xlane.xlu0 %2849
    %2851 = vmax.xlane.f32.xlu0 %v2794
    %v2852 = vpop.xlane.xlu0 %2851
    %2853 = vmax.xlane.f32.xlu0 %v2795
    %v2854 = vpop.xlane.xlu0 %2853
    %2855 = vmax.xlane.f32.xlu0 %v2796
    %v2856 = vpop.xlane.xlu0 %2855
    %2857 = vmax.xlane.f32.xlu0 %v2797
    %v2858 = vpop.xlane.xlu0 %2857
    %2859 = vmax.xlane.f32.xlu0 %v2798
    %v2860 = vpop.xlane.xlu0 %2859
    %2861 = vmax.xlane.f32.xlu0 %v2799
    %v2862 = vpop.xlane.xlu0 %2861
    %2863 = vmax.xlane.f32.xlu0 %v2800
    %v2864 = vpop.xlane.xlu0 %2863
    %v2865 = vsub.f32 %v2769, %v2802
    %v2866 = vsub.f32 %v2770, %v2804
    %v2867 = vsub.f32 %v2771, %v2806
    %v2868 = vsub.f32 %v2772, %v2808
    %v2869 = vsub.f32 %v2773, %v2810
    %v2870 = vsub.f32 %v2774, %v2812
    %v2871 = vsub.f32 %v2775, %v2814
    %v2872 = vsub.f32 %v2776, %v2816
    %v2873 = vsub.f32 %v2777, %v2818
    %v2874 = vsub.f32 %v2778, %v2820
    %v2875 = vsub.f32 %v2779, %v2822
    %v2876 = vsub.f32 %v2780, %v2824
    %v2877 = vsub.f32 %v2781, %v2826
    %v2878 = vsub.f32 %v2782, %v2828
    %v2879 = vsub.f32 %v2783, %v2830
    %v2880 = vsub.f32 %v2784, %v2832
    %v2881 = vsub.f32 %v2785, %v2834
    %v2882 = vsub.f32 %v2786, %v2836
    %v2883 = vsub.f32 %v2787, %v2838
    %v2884 = vsub.f32 %v2788, %v2840
    %v2885 = vsub.f32 %v2789, %v2842
    %v2886 = vsub.f32 %v2790, %v2844
    %v2887 = vsub.f32 %v2791, %v2846
    %v2888 = vsub.f32 %v2792, %v2848
    %v2889 = vsub.f32 %v2793, %v2850
    %v2890 = vsub.f32 %v2794, %v2852
    %v2891 = vsub.f32 %v2795, %v2854
    %v2892 = vsub.f32 %v2796, %v2856
    %v2893 = vsub.f32 %v2797, %v2858
    %v2894 = vsub.f32 %v2798, %v2860
    %v2895 = vsub.f32 %v2799, %v2862
    %v2896 = vsub.f32 %v2800, %v2864
    %v2897 = vmul.f32 %v2865, 1.442695
    %v2898 = vpow.pop %v2897
    %v2899 = vmul.f32 %v2866, 1.442695
    %v2900 = vpow.pop %v2899
    %v2901 = vmul.f32 %v2867, 1.442695
    %v2902 = vpow.pop %v2901
    %v2903 = vmul.f32 %v2868, 1.442695
    %v2904 = vpow.pop %v2903
    %v2905 = vmul.f32 %v2869, 1.442695
    %v2906 = vpow.pop %v2905
    %v2907 = vmul.f32 %v2870, 1.442695
    %v2908 = vpow.pop %v2907
    %v2909 = vmul.f32 %v2871, 1.442695
    %v2910 = vpow.pop %v2909
    %v2911 = vmul.f32 %v2872, 1.442695
    %v2912 = vpow.pop %v2911
    %v2913 = vmul.f32 %v2873, 1.442695
    %v2914 = vpow.pop %v2913
    %v2915 = vmul.f32 %v2874, 1.442695
    %v2916 = vpow.pop %v2915
    %v2917 = vmul.f32 %v2875, 1.442695
    %v2918 = vpow.pop %v2917
    %v2919 = vmul.f32 %v2876, 1.442695
    %v2920 = vpow.pop %v2919
    %v2921 = vmul.f32 %v2877, 1.442695
    %v2922 = vpow.pop %v2921
    %v2923 = vmul.f32 %v2878, 1.442695
    %v2924 = vpow.pop %v2923
    %v2925 = vmul.f32 %v2879, 1.442695
    %v2926 = vpow.pop %v2925
    %v2927 = vmul.f32 %v2880, 1.442695
    %v2928 = vpow.pop %v2927
    %v2929 = vmul.f32 %v2881, 1.442695
    %v2930 = vpow.pop %v2929
    %v2931 = vmul.f32 %v2882, 1.442695
    %v2932 = vpow.pop %v2931
    %v2933 = vmul.f32 %v2883, 1.442695
    %v2934 = vpow.pop %v2933
    %v2935 = vmul.f32 %v2884, 1.442695
    %v2936 = vpow.pop %v2935
    %v2937 = vmul.f32 %v2885, 1.442695
    %v2938 = vpow.pop %v2937
    %v2939 = vmul.f32 %v2886, 1.442695
    %v2940 = vpow.pop %v2939
    %v2941 = vmul.f32 %v2887, 1.442695
    %v2942 = vpow.pop %v2941
    %v2943 = vmul.f32 %v2888, 1.442695
    %v2944 = vpow.pop %v2943
    %v2945 = vmul.f32 %v2889, 1.442695
    %v2946 = vpow.pop %v2945
    %v2947 = vmul.f32 %v2890, 1.442695
    %v2948 = vpow.pop %v2947
    %v2949 = vmul.f32 %v2891, 1.442695
    %v2950 = vpow.pop %v2949
    %v2951 = vmul.f32 %v2892, 1.442695
    %v2952 = vpow.pop %v2951
    %v2953 = vmul.f32 %v2893, 1.442695
    %v2954 = vpow.pop %v2953
    %v2955 = vmul.f32 %v2894, 1.442695
    %v2956 = vpow.pop %v2955
    %v2957 = vmul.f32 %v2895, 1.442695
    %v2958 = vpow.pop %v2957
    %v2959 = vmul.f32 %v2896, 1.442695
    %v2960 = vpow.pop %v2959
    %2961 = vadd.xlane.f32.xlu0 %v2898
    %v2962 = vpop.xlane.xlu0 %2961
    %2963 = vadd.xlane.f32.xlu0 %v2900
    %v2964 = vpop.xlane.xlu0 %2963
    %2965 = vadd.xlane.f32.xlu0 %v2902
    %v2966 = vpop.xlane.xlu0 %2965
    %2967 = vadd.xlane.f32.xlu0 %v2904
    %v2968 = vpop.xlane.xlu0 %2967
    %2969 = vadd.xlane.f32.xlu0 %v2906
    %v2970 = vpop.xlane.xlu0 %2969
    %2971 = vadd.xlane.f32.xlu0 %v2908
    %v2972 = vpop.xlane.xlu0 %2971
    %2973 = vadd.xlane.f32.xlu0 %v2910
    %v2974 = vpop.xlane.xlu0 %2973
    %2975 = vadd.xlane.f32.xlu0 %v2912
    %v2976 = vpop.xlane.xlu0 %2975
    %2977 = vadd.xlane.f32.xlu0 %v2914
    %v2978 = vpop.xlane.xlu0 %2977
    %2979 = vadd.xlane.f32.xlu0 %v2916
    %v2980 = vpop.xlane.xlu0 %2979
    %2981 = vadd.xlane.f32.xlu0 %v2918
    %v2982 = vpop.xlane.xlu0 %2981
    %2983 = vadd.xlane.f32.xlu0 %v2920
    %v2984 = vpop.xlane.xlu0 %2983
    %2985 = vadd.xlane.f32.xlu0 %v2922
    %v2986 = vpop.xlane.xlu0 %2985
    %2987 = vadd.xlane.f32.xlu0 %v2924
    %v2988 = vpop.xlane.xlu0 %2987
    %2989 = vadd.xlane.f32.xlu0 %v2926
    %v2990 = vpop.xlane.xlu0 %2989
    %2991 = vadd.xlane.f32.xlu0 %v2928
    %v2992 = vpop.xlane.xlu0 %2991
    %2993 = vadd.xlane.f32.xlu0 %v2930
    %v2994 = vpop.xlane.xlu0 %2993
    %2995 = vadd.xlane.f32.xlu0 %v2932
    %v2996 = vpop.xlane.xlu0 %2995
    %2997 = vadd.xlane.f32.xlu0 %v2934
    %v2998 = vpop.xlane.xlu0 %2997
    %2999 = vadd.xlane.f32.xlu0 %v2936
    %v3000 = vpop.xlane.xlu0 %2999
    %3001 = vadd.xlane.f32.xlu0 %v2938
    %v3002 = vpop.xlane.xlu0 %3001
    %3003 = vadd.xlane.f32.xlu0 %v2940
    %v3004 = vpop.xlane.xlu0 %3003
    %3005 = vadd.xlane.f32.xlu0 %v2942
    %v3006 = vpop.xlane.xlu0 %3005
    %3007 = vadd.xlane.f32.xlu0 %v2944
    %v3008 = vpop.xlane.xlu0 %3007
    %3009 = vadd.xlane.f32.xlu0 %v2946
    %v3010 = vpop.xlane.xlu0 %3009
    %3011 = vadd.xlane.f32.xlu0 %v2948
    %v3012 = vpop.xlane.xlu0 %3011
    %3013 = vadd.xlane.f32.xlu0 %v2950
    %v3014 = vpop.xlane.xlu0 %3013
    %3015 = vadd.xlane.f32.xlu0 %v2952
    %v3016 = vpop.xlane.xlu0 %3015
    %3017 = vadd.xlane.f32.xlu0 %v2954
    %v3018 = vpop.xlane.xlu0 %3017
    %3019 = vadd.xlane.f32.xlu0 %v2956
    %v3020 = vpop.xlane.xlu0 %3019
    %3021 = vadd.xlane.f32.xlu0 %v2958
    %v3022 = vpop.xlane.xlu0 %3021
    %3023 = vadd.xlane.f32.xlu0 %v2960
    %v3024 = vpop.xlane.xlu0 %3023
    %v3025 = vrcp.pop %v2962
    %v3026 = vrcp.pop %v2964
    %v3027 = vrcp.pop %v2966
    %v3028 = vrcp.pop %v2968
    %v3029 = vrcp.pop %v2970
    %v3030 = vrcp.pop %v2972
    %v3031 = vrcp.pop %v2974
    %v3032 = vrcp.pop %v2976
    %v3033 = vrcp.pop %v2978
    %v3034 = vrcp.pop %v2980
    %v3035 = vrcp.pop %v2982
    %v3036 = vrcp.pop %v2984
    %v3037 = vrcp.pop %v2986
    %v3038 = vrcp.pop %v2988
    %v3039 = vrcp.pop %v2990
    %v3040 = vrcp.pop %v2992
    %v3041 = vrcp.pop %v2994
    %v3042 = vrcp.pop %v2996
    %v3043 = vrcp.pop %v2998
    %v3044 = vrcp.pop %v3000
    %v3045 = vrcp.pop %v3002
    %v3046 = vrcp.pop %v3004
    %v3047 = vrcp.pop %v3006
    %v3048 = vrcp.pop %v3008
    %v3049 = vrcp.pop %v3010
    %v3050 = vrcp.pop %v3012
    %v3051 = vrcp.pop %v3014
    %v3052 = vrcp.pop %v3016
    %v3053 = vrcp.pop %v3018
    %v3054 = vrcp.pop %v3020
    %v3055 = vrcp.pop %v3022
    %v3056 = vrcp.pop %v3024
    %v3057 = vmul.f32 %v2898, %v3025
    %v3058 = vmul.f32 %v2900, %v3026
    %v3059 = vmul.f32 %v2902, %v3027
    %v3060 = vmul.f32 %v2904, %v3028
    %v3061 = vmul.f32 %v2906, %v3029
    %v3062 = vmul.f32 %v2908, %v3030
    %v3063 = vmul.f32 %v2910, %v3031
    %v3064 = vmul.f32 %v2912, %v3032
    %v3065 = vmul.f32 %v2914, %v3033
    %v3066 = vmul.f32 %v2916, %v3034
    %v3067 = vmul.f32 %v2918, %v3035
    %v3068 = vmul.f32 %v2920, %v3036
    %v3069 = vmul.f32 %v2922, %v3037
    %v3070 = vmul.f32 %v2924, %v3038
    %v3071 = vmul.f32 %v2926, %v3039
    %v3072 = vmul.f32 %v2928, %v3040
    %v3073 = vmul.f32 %v2930, %v3041
    %v3074 = vmul.f32 %v2932, %v3042
    %v3075 = vmul.f32 %v2934, %v3043
    %v3076 = vmul.f32 %v2936, %v3044
    %v3077 = vmul.f32 %v2938, %v3045
    %v3078 = vmul.f32 %v2940, %v3046
    %v3079 = vmul.f32 %v2942, %v3047
    %v3080 = vmul.f32 %v2944, %v3048
    %v3081 = vmul.f32 %v2946, %v3049
    %v3082 = vmul.f32 %v2948, %v3050
    %v3083 = vmul.f32 %v2950, %v3051
    %v3084 = vmul.f32 %v2952, %v3052
    %v3085 = vmul.f32 %v2954, %v3053
    %v3086 = vmul.f32 %v2956, %v3054
    %v3087 = vmul.f32 %v2958, %v3055
    %v3088 = vmul.f32 %v2960, %v3056
    %3089 = vst [vmem:[#allocation10] sm:$0xff] %v3057
    %3090 = vst [vmem:[#allocation10 + $0x8] sm:$0xff] %v3058
    %3091 = vst [vmem:[#allocation10 + $0x10] sm:$0xff] %v3059
    %3092 = vst [vmem:[#allocation10 + $0x18] sm:$0xff] %v3060
    %3093 = vst [vmem:[#allocation10 + $0x20] sm:$0xff] %v3061
    %3094 = vst [vmem:[#allocation10 + $0x28] sm:$0xff] %v3062
    %3095 = vst [vmem:[#allocation10 + $0x30] sm:$0xff] %v3063
    %3096 = vst [vmem:[#allocation10 + $0x38] sm:$0xff] %v3064
    %3097 = vst [vmem:[#allocation10 + $0x40] sm:$0xff] %v3065
    %3098 = vst [vmem:[#allocation10 + $0x48] sm:$0xff] %v3066
    %3099 = vst [vmem:[#allocation10 + $0x50] sm:$0xff] %v3067
    %3100 = vst [vmem:[#allocation10 + $0x58] sm:$0xff] %v3068
    %3101 = vst [vmem:[#allocation10 + $0x60] sm:$0xff] %v3069
    %3102 = vst [vmem:[#allocation10 + $0x68] sm:$0xff] %v3070
    %3103 = vst [vmem:[#allocation10 + $0x70] sm:$0xff] %v3071
    %3104 = vst [vmem:[#allocation10 + $0x78] sm:$0xff] %v3072
    %3105 = vst [vmem:[#allocation10 + $0x80] sm:$0xff] %v3073
    %3106 = vst [vmem:[#allocation10 + $0x88] sm:$0xff] %v3074
    %3107 = vst [vmem:[#allocation10 + $0x90] sm:$0xff] %v3075
    %3108 = vst [vmem:[#allocation10 + $0x98] sm:$0xff] %v3076
    %3109 = vst [vmem:[#allocation10 + $0xa0] sm:$0xff] %v3077
    %3110 = vst [vmem:[#allocation10 + $0xa8] sm:$0xff] %v3078
    %3111 = vst [vmem:[#allocation10 + $0xb0] sm:$0xff] %v3079
    %3112 = vst [vmem:[#allocation10 + $0xb8] sm:$0xff] %v3080
    %3113 = vst [vmem:[#allocation10 + $0xc0] sm:$0xff] %v3081
    %3114 = vst [vmem:[#allocation10 + $0xc8] sm:$0xff] %v3082
    %3115 = vst [vmem:[#allocation10 + $0xd0] sm:$0xff] %v3083
    %3116 = vst [vmem:[#allocation10 + $0xd8] sm:$0xff] %v3084
    %3117 = vst [vmem:[#allocation10 + $0xe0] sm:$0xff] %v3085
    %3118 = vst [vmem:[#allocation10 + $0xe8] sm:$0xff] %v3086
    %3119 = vst [vmem:[#allocation10 + $0xf0] sm:$0xff] %v3087
    %3120 = vst [vmem:[#allocation10 + $0xf8] sm:$0xff] %v3088
    // Predicated region
    $region54: #{tpu_custom_call.1} parent=1 // pred_check
      _
    $region55: #{tpu_custom_call.1} parent=1 // pred_check_branch
      %3122 = sbr.rel (0) target = $region57
    $region56: #{tpu_custom_call.1} parent=1 // pred_region
      %3124 = vsyncadd [#allocation4], 0
      %s3125 = sshll.u32 [#allocation10], 4
      %s3126 = int_to_ptr.vmem [resolvable:$true] %s3125
      %s3127 = sshll.u32 %s9, 4
      %s3128 = int_to_ptr.hbm [resolvable:$true] %s3127
      %3133 = dma.vmem_to_hbm [thread:$0]  %s3126, 4096, %s3128, [#allocation4], 128, 128, 8
    $region57: #{tpu_custom_call.1} parent=1 // pred_fallthru
      _
    // Predicated region
    $region58: #{tpu_custom_call.1} parent=1 // pred_check
      _
    $region59: #{tpu_custom_call.1} parent=1 // pred_check_branch
      %3135 = sbr.rel (0) target = $region61
    $region60: #{tpu_custom_call.1} parent=1 // pred_region
      %3137 = dma.done [#allocation4], 4096
    $region61: #{tpu_custom_call.1} parent=1 // pred_fallthru
      _
    %3138 = vsyncpa [#allocation3], 1
    %3139 = vsyncpa [#allocation6], 1
    %3140 = vsyncpa [#allocation9], 1
    %3141 = vsyncpa [#allocation4], 1

</llo_original>
